<compile_context>
chip_gen: v6e
topology: v6e:2x2x1
jax: 0.10.0
libtpu: 0.0.40
codegen_flags: <defaults>
</compile_context>

<pallas_src>
import functools
from typing import Any, NamedTuple

import jax
import jax.numpy as jnp
from jax import lax
from jax.experimental import pallas as pl
from jax.experimental.pallas import tpu as pltpu


def _round_up(x, m):
    return (x + m - 1) // m * m


def _tpu_info():
    """Best-effort (vmem_capacity_bytes, num_tensorcores) query."""
    vmem_cap = 128 << 20
    num_cores = 1
    try:
        info = pltpu.get_tpu_info()
        vmem_cap = int(getattr(info, "vmem_capacity_bytes", vmem_cap))
        for name in ("num_cores", "core_count", "tensorcore_count",
                     "num_tensorcores"):
            v = getattr(info, name, None)
            if v:
                num_cores = int(v)
                break
    except Exception:
        pass
    if num_cores == 1:
        try:
            dev = jax.devices()[0]
            for name in ("num_cores", "core_count"):
                v = getattr(dev, name, None)
                if v:
                    num_cores = int(v)
                    break
        except Exception:
            pass
    if num_cores == 1 and vmem_cap <= (96 << 20):
        # v7x exposes 64 MiB of VMEM per TensorCore and has 2 TCs per chip;
        # v5e/v6e report 128 MiB and have a single TensorCore.
        num_cores = 2
    return vmem_cap, num_cores


# --------------------------------------------------------------------------- #
# Parameter preparation (one-time; hoisted out of the per-call forward)       #
# --------------------------------------------------------------------------- #
class PreparedParams(NamedTuple):
    w_in: jax.Array
    b_in: jax.Array
    w_blk: jax.Array
    b_blk: jax.Array
    w_out: jax.Array
    b_out: jax.Array
    in_dim: int
    h_nodes: int
    out_dim: int
    in_pad: int
    h_pad: int
    out_pad: int
    num_blocks: int
    block_length: int
    mxu_dtype: Any


def prepare_params(params, *, num_blocks, block_length, mxu_dtype=jnp.bfloat16):
    """Pad feature dims to 128 lanes and cast weights to the MXU dtype, once."""
    w_in, b_in, w_blk, b_blk, w_out, b_out = params
    in_dim, h_nodes = w_in.shape
    out_dim = w_out.shape[1]
    L = num_blocks * block_length

    in_pad = _round_up(in_dim, 128)
    h_pad = _round_up(h_nodes, 128)
    out_pad = _round_up(out_dim, 128)

    w_in_p = (jnp.zeros((in_pad, h_pad), jnp.float32)
              .at[:in_dim, :h_nodes].set(w_in).astype(mxu_dtype))
    b_in_p = jnp.zeros((1, h_pad), jnp.float32).at[0, :h_nodes].set(b_in)
    w_blk_p = (jnp.zeros((L, h_pad, h_pad), jnp.float32)
               .at[:, :h_nodes, :h_nodes].set(w_blk.reshape(L, h_nodes, h_nodes))
               .astype(mxu_dtype))
    b_blk_p = (jnp.zeros((L, 1, h_pad), jnp.float32)
               .at[:, 0, :h_nodes].set(b_blk.reshape(L, h_nodes)))
    w_out_p = (jnp.zeros((h_pad, out_pad), jnp.float32)
               .at[:h_nodes, :out_dim].set(w_out).astype(mxu_dtype))
    b_out_p = jnp.zeros((1, out_pad), jnp.float32).at[0, :out_dim].set(b_out)

    return PreparedParams(w_in_p, b_in_p, w_blk_p, b_blk_p, w_out_p, b_out_p,
                          in_dim, h_nodes, out_dim, in_pad, h_pad, out_pad,
                          num_blocks, block_length, mxu_dtype)


# --------------------------------------------------------------------------- #
# Kernel                                                                      #
# --------------------------------------------------------------------------- #
def _res_deep_kernel(x_ref, w_in_ref, b_in_ref, w_blk_ref, b_blk_ref,
                     w_out_ref, b_out_ref, o_ref, *, num_blocks, block_length,
                     mxu_dtype, static_unroll):
    # x_ref: (tm, in_pad) f32 -> o_ref: (tm, out_pad) f32

    def dense(h, w, b):
        # bf16 MXU operands, f32 accumulation; elementwise math stays f32.
        return jnp.dot(h.astype(mxu_dtype), w,
                       preferred_element_type=jnp.float32) + b

    # Input layer + ReLU.
    h = jnp.maximum(dense(x_ref[...], w_in_ref[...], b_in_ref[...]), 0.0)

    if static_unroll:
        # Small nets: fully unrolled, static weight indices (cheapest access,
        # maximal LLO overlap across layers).
        for bi in range(num_blocks):
            h_in = h
            for li in range(block_length):
                idx = bi * block_length + li
                h = jnp.maximum(dense(h, w_blk_ref[idx], b_blk_ref[idx]), 0.0)
            h = h_in + h
    else:
        # Deep nets: loop over blocks to bound vreg live ranges; the short
        # inner block_length loop stays unrolled.
        def block_body(bi, h):
            h_in = h
            for li in range(block_length):
                idx = bi * block_length + li
                h = jnp.maximum(dense(h, w_blk_ref[idx], b_blk_ref[idx]), 0.0)
            return h_in + h

        h = lax.fori_loop(0, num_blocks, block_body, h)

    # Output layer (no nonlinearity).
    o_ref[...] = dense(h, w_out_ref[...], b_out_ref[...]).astype(o_ref.dtype)


# --------------------------------------------------------------------------- #
# Host wrapper                                                                #
# --------------------------------------------------------------------------- #
def res_deep_block_forward(x, prepared: PreparedParams, *, tm=None):
    """x: (batch, in_dim) float32. Returns (batch, out_dim) float32."""
    p = prepared
    batch, in_dim = x.shape
    assert in_dim == p.in_dim
    L = p.num_blocks * p.block_length

    if tm is None:
        # Wider hidden layers amortize per-step overhead better with bigger M.
        tm = 512 if p.h_pad >= 256 else 256

    vmem_cap, num_cores = _tpu_info()

    # ---- batch tiling: minimal padding; split only on multi-TC chips -------
    tm_req = max(8, min(tm, _round_up(batch, 8)))
    num_tiles = -(-batch // tm_req)
    if num_cores > 1 and _round_up(batch, 8) >= 8 * num_cores:
        # Round the grid to a multiple of the TensorCore count (megacore).
        num_tiles = -(-max(num_tiles, num_cores) // num_cores) * num_cores
    tm_eff = _round_up(-(-batch // num_tiles), 8)
    padded_batch = tm_eff * num_tiles
    grid = (num_tiles,)

    xp = (jnp.zeros((padded_batch, p.in_pad), jnp.float32)
          .at[:batch, :p.in_dim].set(x))

    # ---- VMEM / cost bookkeeping -------------------------------------------
    w_itemsize = jnp.dtype(p.mxu_dtype).itemsize
    param_bytes = ((p.in_pad * p.h_pad + L * p.h_pad * p.h_pad
                    + p.h_pad * p.out_pad) * w_itemsize
                   + (p.h_pad + L * p.h_pad + p.out_pad) * 4)
    io_tile_bytes = 2 * tm_eff * (p.in_pad + p.out_pad) * 4   # double-buffered x/o
    act_bytes = 4 * tm_eff * p.h_pad * 4                      # activation slack
    vmem_budget = max(32 << 20, int(vmem_cap * 0.85))         # per-chip cap

    flops = 2 * padded_batch * (p.in_pad * p.h_pad
                                + L * p.h_pad * p.h_pad
                                + p.h_pad * p.out_pad)
    # Constant-index weight blocks are DMA'd once, not per grid step.
    bytes_accessed = padded_batch * (p.in_pad + p.out_pad) * 4 + param_bytes
    cost = pl.CostEstimate(flops=flops, transcendentals=0,
                           bytes_accessed=bytes_accessed)

    static_unroll = L <= 16
    kernel = functools.partial(
        _res_deep_kernel, num_blocks=p.num_blocks, block_length=p.block_length,
        mxu_dtype=p.mxu_dtype, static_unroll=static_unroll)

    def build_and_run(single_buffer_weights):
        weight_bufs = 1 if single_buffer_weights else 2
        needed = (weight_bufs * param_bytes + io_tile_bytes + act_bytes
                  + (8 << 20))
        vmem_limit = int(min(vmem_budget, max(needed, 32 << 20)))

        def const_spec(shape):
            nd = len(shape)
            idx = lambda i: (0,) * nd
            if single_buffer_weights:
                # Fetched once (constant index map); single buffer halves the
                # resident weight VMEM vs the default double-buffered pipeline.
                return pl.BlockSpec(shape, idx, pipeline_mode=pl.Buffered(1))
            return pl.BlockSpec(shape, idx)

        return pl.pallas_call(
            kernel,
            out_shape=jax.ShapeDtypeStruct((padded_batch, p.out_pad),
                                           jnp.float32),
            grid_spec=pltpu.PrefetchScalarGridSpec(
                num_scalar_prefetch=0,
                grid=grid,
                in_specs=[
                    # batch-tiled input (lane-dense)
                    pl.BlockSpec((tm_eff, p.in_pad), lambda i: (i, 0)),
                    # resident weights / biases: full arrays, constant index
                    const_spec((p.in_pad, p.h_pad)),
                    const_spec((1, p.h_pad)),
                    const_spec((L, p.h_pad, p.h_pad)),
                    const_spec((L, 1, p.h_pad)),
                    const_spec((p.h_pad, p.out_pad)),
                    const_spec((1, p.out_pad)),
                ],
                out_specs=pl.BlockSpec((tm_eff, p.out_pad), lambda i: (i, 0)),
            ),
            compiler_params=pltpu.CompilerParams(
                dimension_semantics=("parallel",),
                vmem_limit_bytes=vmem_limit),
            cost_estimate=cost,
        )(xp, p.w_in, p.b_in, p.w_blk, p.b_blk, p.w_out, p.b_out)

    try:
        out_padded = jax.block_until_ready(build_and_run(True))
    except Exception:
        # Fallback for JAX/Mosaic versions without pipeline_mode=Buffered(1):
        # identical math, default double-buffered weight blocks.
        out_padded = build_and_run(False)

    # Strip batch / lane padding.
    return out_padded[:batch, :p.out_dim]


# --------------------------------------------------------------------------- #
# Reference / init                                                            #
# --------------------------------------------------------------------------- #
def init_params(key, in_dim, h_nodes, out_dim, num_blocks, block_length):
    """Deterministic parameter init (xavier-uniform weights, uniform biases)."""
    def xavier(k, fan_in, fan_out, shape):
        bound = jnp.sqrt(6.0 / (fan_in + fan_out))
        return jax.random.uniform(k, shape, jnp.float32, -bound, bound)

    def bias(k, fan_in, shape):
        bound = 1.0 / jnp.sqrt(jnp.float32(fan_in))
        return jax.random.uniform(k, shape, jnp.float32, -bound, bound)

    keys = jax.random.split(key, 6)
    w_in = xavier(keys[0], in_dim, h_nodes, (in_dim, h_nodes))
    b_in = bias(keys[1], in_dim, (h_nodes,))
    w_blk = xavier(keys[2], h_nodes, h_nodes,
                   (num_blocks, block_length, h_nodes, h_nodes))
    b_blk = bias(keys[3], h_nodes, (num_blocks, block_length, h_nodes))
    w_out = xavier(keys[4], h_nodes, out_dim, (h_nodes, out_dim))
    b_out = bias(keys[5], h_nodes, (out_dim,))
    return (w_in, b_in, w_blk, b_blk, w_out, b_out)


def reference_forward(x, params, *, num_blocks, block_length,
                      mxu_dtype=jnp.float32):
    """Pure-JAX reference matching the PyTorch forward.

    With mxu_dtype=bf16 it mimics the kernel's matmul-operand cast exactly.
    """
    w_in, b_in, w_blk, b_blk, w_out, b_out = params

    def mm(a, w):
        return jnp.dot(a.astype(mxu_dtype), w.astype(mxu_dtype),
                       preferred_element_type=jnp.float32)

    h = jnp.maximum(mm(x, w_in) + b_in, 0.0)
    for bi in range(num_blocks):
        h_in = h
        for li in range(block_length):
            h = jnp.maximum(mm(h, w_blk[bi, li]) + b_blk[bi, li], 0.0)
        h = h_in + h
    return mm(h, w_out) + b_out


if __name__ == "__main__":
    # Small shapes consistent with the module (in_dim=4, h_nodes=32, out_dim=4).
    batch, in_dim, h_nodes, out_dim = 16, 4, 32, 4
    num_blocks, block_length = 2, 2

    key = jax.random.PRNGKey(0)
    k_x, k_p = jax.random.split(key)
    x = jax.random.normal(k_x, (batch, in_dim), jnp.float32)
    params = init_params(k_p, in_dim, h_nodes, out_dim, num_blocks, block_length)

    # One-time parameter prep (padding + bf16 cast hoisted out of the hot path).
    prepared = prepare_params(params, num_blocks=num_blocks,
                              block_length=block_length)

    out = res_deep_block_forward(x, prepared)
    out = jax.block_until_ready(out)
    assert out.shape == (batch, out_dim)

    # Exact-semantics check against a reference that mimics the bf16 MXU cast.
    ref_bf16 = reference_forward(
        x, params, num_blocks=num_blocks, block_length=block_length,
        mxu_dtype=jnp.bfloat16)
    assert jnp.allclose(out, ref_bf16, atol=1e-3, rtol=1e-3), \
        "mismatch vs bf16-matched reference"

    # Loose sanity check against the pure-f32 PyTorch-equivalent math.
    ref_f32 = reference_forward(
        x, params, num_blocks=num_blocks, block_length=block_length)
    assert jnp.allclose(out, ref_f32, atol=5e-2, rtol=5e-2), \
        "mismatch vs f32 reference"

    print("KERNEL_OK")
</pallas_src>

<mosaic_0001>
module attributes {stable_mosaic.version = 11 : i64} {
  func.func @_res_deep_kernel(%arg0: i32, %arg1: memref<16x128xf32, #tpu.memory_space<vmem>>, %arg2: memref<128x128xbf16, #tpu.memory_space<vmem>>, %arg3: memref<1x128xf32, #tpu.memory_space<vmem>>, %arg4: memref<4x128x128xbf16, #tpu.memory_space<vmem>>, %arg5: memref<4x1x128xf32, #tpu.memory_space<vmem>>, %arg6: memref<128x128xbf16, #tpu.memory_space<vmem>>, %arg7: memref<1x128xf32, #tpu.memory_space<vmem>>, %arg8: memref<16x128xf32, #tpu.memory_space<vmem>>) attributes {dimension_semantics = [#tpu.dimension_semantics<parallel>], iteration_bounds = array<i64: 1>, scalar_prefetch = 0 : i64, scratch_operands = 0 : i64, tpu.core_type = #tpu.core_type<tc>, window_params = [{transform_indices = @transform_0, window_bounds = array<i64: 16, 128>}, {pipeline_mode = #tpu.pipeline_mode<synchronous>, transform_indices = @transform_1, window_bounds = array<i64: 128, 128>}, {pipeline_mode = #tpu.pipeline_mode<synchronous>, transform_indices = @transform_2, window_bounds = array<i64: 1, 128>}, {pipeline_mode = #tpu.pipeline_mode<synchronous>, transform_indices = @transform_3, window_bounds = array<i64: 4, 128, 128>}, {pipeline_mode = #tpu.pipeline_mode<synchronous>, transform_indices = @transform_4, window_bounds = array<i64: 4, 1, 128>}, {pipeline_mode = #tpu.pipeline_mode<synchronous>, transform_indices = @transform_5, window_bounds = array<i64: 128, 128>}, {pipeline_mode = #tpu.pipeline_mode<synchronous>, transform_indices = @transform_6, window_bounds = array<i64: 1, 128>}, {transform_indices = @transform_7, window_bounds = array<i64: 16, 128>}]} {
    %c0 = arith.constant 0 : index
    %c0_0 = arith.constant 0 : index
    %0 = vector.load %arg1[%c0, %c0_0] : memref<16x128xf32, #tpu.memory_space<vmem>>, vector<16x128xf32>
    %c0_1 = arith.constant 0 : index
    %c0_2 = arith.constant 0 : index
    %1 = vector.load %arg2[%c0_1, %c0_2] : memref<128x128xbf16, #tpu.memory_space<vmem>>, vector<128x128xbf16>
    %c0_3 = arith.constant 0 : index
    %c0_4 = arith.constant 0 : index
    %2 = vector.load %arg3[%c0_3, %c0_4] : memref<1x128xf32, #tpu.memory_space<vmem>>, vector<1x128xf32>
    %3 = arith.truncf %0 : vector<16x128xf32> to vector<16x128xbf16>
    %cst = arith.constant dense<0.000000e+00> : vector<16x128xf32>
    %4 = tpu.matmul %3, %1, %cst {dimension_numbers = #tpu.dot_dimension_numbers<[1], [0], [0], [1], [0, 0, 1, 1], [], []>} : vector<16x128xbf16>, vector<128x128xbf16>, vector<16x128xf32> -> vector<16x128xf32>
    %5 = vector.broadcast %2 : vector<1x128xf32> to vector<16x128xf32>
    %6 = arith.addf %4, %5 : vector<16x128xf32>
    %cst_5 = arith.constant 0.000000e+00 : f32
    %7 = vector.broadcast %cst_5 : f32 to vector<16x128xf32>
    %8 = arith.maximumf %6, %7 : vector<16x128xf32>
    %c0_6 = arith.constant 0 : index
    %c0_7 = arith.constant 0 : index
    %c0_8 = arith.constant 0 : index
    %9 = vector.load %arg4[%c0_6, %c0_7, %c0_8] : memref<4x128x128xbf16, #tpu.memory_space<vmem>>, vector<1x128x128xbf16>
    %10 = vector.shape_cast %9 : vector<1x128x128xbf16> to vector<128x128xbf16>
    %c0_9 = arith.constant 0 : index
    %c0_10 = arith.constant 0 : index
    %c0_11 = arith.constant 0 : index
    %11 = vector.load %arg5[%c0_9, %c0_10, %c0_11] : memref<4x1x128xf32, #tpu.memory_space<vmem>>, vector<1x1x128xf32>
    %12 = vector.shape_cast %11 : vector<1x1x128xf32> to vector<1x128xf32>
    %13 = arith.truncf %8 : vector<16x128xf32> to vector<16x128xbf16>
    %cst_12 = arith.constant dense<0.000000e+00> : vector<16x128xf32>
    %14 = tpu.matmul %13, %10, %cst_12 {dimension_numbers = #tpu.dot_dimension_numbers<[1], [0], [0], [1], [0, 0, 1, 1], [], []>} : vector<16x128xbf16>, vector<128x128xbf16>, vector<16x128xf32> -> vector<16x128xf32>
    %15 = vector.broadcast %12 : vector<1x128xf32> to vector<16x128xf32>
    %16 = arith.addf %14, %15 : vector<16x128xf32>
    %cst_13 = arith.constant 0.000000e+00 : f32
    %17 = vector.broadcast %cst_13 : f32 to vector<16x128xf32>
    %18 = arith.maximumf %16, %17 : vector<16x128xf32>
    %c1 = arith.constant 1 : index
    %c0_14 = arith.constant 0 : index
    %c0_15 = arith.constant 0 : index
    %19 = vector.load %arg4[%c1, %c0_14, %c0_15] : memref<4x128x128xbf16, #tpu.memory_space<vmem>>, vector<1x128x128xbf16>
    %20 = vector.shape_cast %19 : vector<1x128x128xbf16> to vector<128x128xbf16>
    %c1_16 = arith.constant 1 : index
    %c0_17 = arith.constant 0 : index
    %c0_18 = arith.constant 0 : index
    %21 = vector.load %arg5[%c1_16, %c0_17, %c0_18] : memref<4x1x128xf32, #tpu.memory_space<vmem>>, vector<1x1x128xf32>
    %22 = vector.shape_cast %21 : vector<1x1x128xf32> to vector<1x128xf32>
    %23 = arith.truncf %18 : vector<16x128xf32> to vector<16x128xbf16>
    %cst_19 = arith.constant dense<0.000000e+00> : vector<16x128xf32>
    %24 = tpu.matmul %23, %20, %cst_19 {dimension_numbers = #tpu.dot_dimension_numbers<[1], [0], [0], [1], [0, 0, 1, 1], [], []>} : vector<16x128xbf16>, vector<128x128xbf16>, vector<16x128xf32> -> vector<16x128xf32>
    %25 = vector.broadcast %22 : vector<1x128xf32> to vector<16x128xf32>
    %26 = arith.addf %24, %25 : vector<16x128xf32>
    %cst_20 = arith.constant 0.000000e+00 : f32
    %27 = vector.broadcast %cst_20 : f32 to vector<16x128xf32>
    %28 = arith.maximumf %26, %27 : vector<16x128xf32>
    %29 = arith.addf %8, %28 : vector<16x128xf32>
    %c2 = arith.constant 2 : index
    %c0_21 = arith.constant 0 : index
    %c0_22 = arith.constant 0 : index
    %30 = vector.load %arg4[%c2, %c0_21, %c0_22] : memref<4x128x128xbf16, #tpu.memory_space<vmem>>, vector<1x128x128xbf16>
    %31 = vector.shape_cast %30 : vector<1x128x128xbf16> to vector<128x128xbf16>
    %c2_23 = arith.constant 2 : index
    %c0_24 = arith.constant 0 : index
    %c0_25 = arith.constant 0 : index
    %32 = vector.load %arg5[%c2_23, %c0_24, %c0_25] : memref<4x1x128xf32, #tpu.memory_space<vmem>>, vector<1x1x128xf32>
    %33 = vector.shape_cast %32 : vector<1x1x128xf32> to vector<1x128xf32>
    %34 = arith.truncf %29 : vector<16x128xf32> to vector<16x128xbf16>
    %cst_26 = arith.constant dense<0.000000e+00> : vector<16x128xf32>
    %35 = tpu.matmul %34, %31, %cst_26 {dimension_numbers = #tpu.dot_dimension_numbers<[1], [0], [0], [1], [0, 0, 1, 1], [], []>} : vector<16x128xbf16>, vector<128x128xbf16>, vector<16x128xf32> -> vector<16x128xf32>
    %36 = vector.broadcast %33 : vector<1x128xf32> to vector<16x128xf32>
    %37 = arith.addf %35, %36 : vector<16x128xf32>
    %cst_27 = arith.constant 0.000000e+00 : f32
    %38 = vector.broadcast %cst_27 : f32 to vector<16x128xf32>
    %39 = arith.maximumf %37, %38 : vector<16x128xf32>
    %c3 = arith.constant 3 : index
    %c0_28 = arith.constant 0 : index
    %c0_29 = arith.constant 0 : index
    %40 = vector.load %arg4[%c3, %c0_28, %c0_29] : memref<4x128x128xbf16, #tpu.memory_space<vmem>>, vector<1x128x128xbf16>
    %41 = vector.shape_cast %40 : vector<1x128x128xbf16> to vector<128x128xbf16>
    %c3_30 = arith.constant 3 : index
    %c0_31 = arith.constant 0 : index
    %c0_32 = arith.constant 0 : index
    %42 = vector.load %arg5[%c3_30, %c0_31, %c0_32] : memref<4x1x128xf32, #tpu.memory_space<vmem>>, vector<1x1x128xf32>
    %43 = vector.shape_cast %42 : vector<1x1x128xf32> to vector<1x128xf32>
    %44 = arith.truncf %39 : vector<16x128xf32> to vector<16x128xbf16>
    %cst_33 = arith.constant dense<0.000000e+00> : vector<16x128xf32>
    %45 = tpu.matmul %44, %41, %cst_33 {dimension_numbers = #tpu.dot_dimension_numbers<[1], [0], [0], [1], [0, 0, 1, 1], [], []>} : vector<16x128xbf16>, vector<128x128xbf16>, vector<16x128xf32> -> vector<16x128xf32>
    %46 = vector.broadcast %43 : vector<1x128xf32> to vector<16x128xf32>
    %47 = arith.addf %45, %46 : vector<16x128xf32>
    %cst_34 = arith.constant 0.000000e+00 : f32
    %48 = vector.broadcast %cst_34 : f32 to vector<16x128xf32>
    %49 = arith.maximumf %47, %48 : vector<16x128xf32>
    %50 = arith.addf %29, %49 : vector<16x128xf32>
    %c0_35 = arith.constant 0 : index
    %c0_36 = arith.constant 0 : index
    %51 = vector.load %arg6[%c0_35, %c0_36] : memref<128x128xbf16, #tpu.memory_space<vmem>>, vector<128x128xbf16>
    %c0_37 = arith.constant 0 : index
    %c0_38 = arith.constant 0 : index
    %52 = vector.load %arg7[%c0_37, %c0_38] : memref<1x128xf32, #tpu.memory_space<vmem>>, vector<1x128xf32>
    %53 = arith.truncf %50 : vector<16x128xf32> to vector<16x128xbf16>
    %cst_39 = arith.constant dense<0.000000e+00> : vector<16x128xf32>
    %54 = tpu.matmul %53, %51, %cst_39 {dimension_numbers = #tpu.dot_dimension_numbers<[1], [0], [0], [1], [0, 0, 1, 1], [], []>} : vector<16x128xbf16>, vector<128x128xbf16>, vector<16x128xf32> -> vector<16x128xf32>
    %55 = vector.broadcast %52 : vector<1x128xf32> to vector<16x128xf32>
    %56 = arith.addf %54, %55 : vector<16x128xf32>
    %c0_40 = arith.constant 0 : index
    %c0_41 = arith.constant 0 : index
    %57 = vector.load %arg8[%c0_40, %c0_41] : memref<16x128xf32, #tpu.memory_space<vmem>>, vector<16x128xf32>
    tpu.vector_store %arg8[%c0_40, %c0_41], %56 {strides = array<i32>} : memref<16x128xf32, #tpu.memory_space<vmem>>, vector<16x128xf32>,
    return
  }
  func.func @transform_0(%arg0: i32) -> (i32, i32) {
    %c0_i32 = arith.constant 0 : i32
    %c0_i32_0 = arith.constant 0 : i32
    return %arg0, %c0_i32 : i32, i32
  }
  func.func @transform_1(%arg0: i32) -> (i32, i32) {
    %c0_i32 = arith.constant 0 : i32
    %c0_i32_0 = arith.constant 0 : i32
    %c0_i32_1 = arith.constant 0 : i32
    return %c0_i32, %c0_i32_0 : i32, i32
  }
  func.func @transform_2(%arg0: i32) -> (i32, i32) {
    %c0_i32 = arith.constant 0 : i32
    %c0_i32_0 = arith.constant 0 : i32
    %c0_i32_1 = arith.constant 0 : i32
    return %c0_i32, %c0_i32_0 : i32, i32
  }
  func.func @transform_3(%arg0: i32) -> (i32, i32, i32) {
    %c0_i32 = arith.constant 0 : i32
    %c0_i32_0 = arith.constant 0 : i32
    %c0_i32_1 = arith.constant 0 : i32
    %c0_i32_2 = arith.constant 0 : i32
    return %c0_i32, %c0_i32_0, %c0_i32_1 : i32, i32, i32
  }
  func.func @transform_4(%arg0: i32) -> (i32, i32, i32) {
    %c0_i32 = arith.constant 0 : i32
    %c0_i32_0 = arith.constant 0 : i32
    %c0_i32_1 = arith.constant 0 : i32
    %c0_i32_2 = arith.constant 0 : i32
    return %c0_i32, %c0_i32_0, %c0_i32_1 : i32, i32, i32
  }
  func.func @transform_5(%arg0: i32) -> (i32, i32) {
    %c0_i32 = arith.constant 0 : i32
    %c0_i32_0 = arith.constant 0 : i32
    %c0_i32_1 = arith.constant 0 : i32
    return %c0_i32, %c0_i32_0 : i32, i32
  }
  func.func @transform_6(%arg0: i32) -> (i32, i32) {
    %c0_i32 = arith.constant 0 : i32
    %c0_i32_0 = arith.constant 0 : i32
    %c0_i32_1 = arith.constant 0 : i32
    return %c0_i32, %c0_i32_0 : i32, i32
  }
  func.func @transform_7(%arg0: i32) -> (i32, i32) {
    %c0_i32 = arith.constant 0 : i32
    %c0_i32_0 = arith.constant 0 : i32
    return %arg0, %c0_i32 : i32, i32
  }
}

module attributes {stable_mosaic.version = 11 : i64} {
  func.func @_res_deep_kernel(%arg0: i32, %arg1: memref<16x128xf32, #tpu.memory_space<vmem>>, %arg2: memref<128x128xbf16, #tpu.memory_space<vmem>>, %arg3: memref<1x128xf32, #tpu.memory_space<vmem>>, %arg4: memref<4x128x128xbf16, #tpu.memory_space<vmem>>, %arg5: memref<4x1x128xf32, #tpu.memory_space<vmem>>, %arg6: memref<128x128xbf16, #tpu.memory_space<vmem>>, %arg7: memref<1x128xf32, #tpu.memory_space<vmem>>, %arg8: memref<16x128xf32, #tpu.memory_space<vmem>>) attributes {dimension_semantics = [#tpu.dimension_semantics<parallel>], iteration_bounds = array<i64: 1>, scalar_prefetch = 0 : i64, scratch_operands = 0 : i64, tpu.core_type = #tpu.core_type<tc>, window_params = [{transform_indices = @transform_0, window_bounds = array<i64: 16, 128>}, {pipeline_mode = #tpu.pipeline_mode<synchronous>, transform_indices = @transform_1, window_bounds = array<i64: 128, 128>}, {pipeline_mode = #tpu.pipeline_mode<synchronous>, transform_indices = @transform_2, window_bounds = array<i64: 1, 128>}, {pipeline_mode = #tpu.pipeline_mode<synchronous>, transform_indices = @transform_3, window_bounds = array<i64: 4, 128, 128>}, {pipeline_mode = #tpu.pipeline_mode<synchronous>, transform_indices = @transform_4, window_bounds = array<i64: 4, 1, 128>}, {pipeline_mode = #tpu.pipeline_mode<synchronous>, transform_indices = @transform_5, window_bounds = array<i64: 128, 128>}, {pipeline_mode = #tpu.pipeline_mode<synchronous>, transform_indices = @transform_6, window_bounds = array<i64: 1, 128>}, {transform_indices = @transform_7, window_bounds = array<i64: 16, 128>}]} {
    %c0 = arith.constant 0 : index
    %c0_0 = arith.constant 0 : index
    %0 = vector.load %arg1[%c0, %c0_0] : memref<16x128xf32, #tpu.memory_space<vmem>>, vector<16x128xf32>
    %c0_1 = arith.constant 0 : index
    %c0_2 = arith.constant 0 : index
    %1 = vector.load %arg2[%c0_1, %c0_2] : memref<128x128xbf16, #tpu.memory_space<vmem>>, vector<128x128xbf16>
    %c0_3 = arith.constant 0 : index
    %c0_4 = arith.constant 0 : index
    %2 = vector.load %arg3[%c0_3, %c0_4] : memref<1x128xf32, #tpu.memory_space<vmem>>, vector<1x128xf32>
    %3 = arith.truncf %0 : vector<16x128xf32> to vector<16x128xbf16>
    %cst = arith.constant dense<0.000000e+00> : vector<16x128xf32>
    %4 = tpu.matmul %3, %1, %cst {dimension_numbers = #tpu.dot_dimension_numbers<[1], [0], [0], [1], [0, 0, 1, 1], [], []>} : vector<16x128xbf16>, vector<128x128xbf16>, vector<16x128xf32> -> vector<16x128xf32>
    %5 = vector.broadcast %2 : vector<1x128xf32> to vector<16x128xf32>
    %6 = arith.addf %4, %5 : vector<16x128xf32>
    %cst_5 = arith.constant 0.000000e+00 : f32
    %7 = vector.broadcast %cst_5 : f32 to vector<16x128xf32>
    %8 = arith.maximumf %6, %7 : vector<16x128xf32>
    %c0_6 = arith.constant 0 : index
    %c0_7 = arith.constant 0 : index
    %c0_8 = arith.constant 0 : index
    %9 = vector.load %arg4[%c0_6, %c0_7, %c0_8] : memref<4x128x128xbf16, #tpu.memory_space<vmem>>, vector<1x128x128xbf16>
    %10 = vector.shape_cast %9 : vector<1x128x128xbf16> to vector<128x128xbf16>
    %c0_9 = arith.constant 0 : index
    %c0_10 = arith.constant 0 : index
    %c0_11 = arith.constant 0 : index
    %11 = vector.load %arg5[%c0_9, %c0_10, %c0_11] : memref<4x1x128xf32, #tpu.memory_space<vmem>>, vector<1x1x128xf32>
    %12 = vector.shape_cast %11 : vector<1x1x128xf32> to vector<1x128xf32>
    %13 = arith.truncf %8 : vector<16x128xf32> to vector<16x128xbf16>
    %cst_12 = arith.constant dense<0.000000e+00> : vector<16x128xf32>
    %14 = tpu.matmul %13, %10, %cst_12 {dimension_numbers = #tpu.dot_dimension_numbers<[1], [0], [0], [1], [0, 0, 1, 1], [], []>} : vector<16x128xbf16>, vector<128x128xbf16>, vector<16x128xf32> -> vector<16x128xf32>
    %15 = vector.broadcast %12 : vector<1x128xf32> to vector<16x128xf32>
    %16 = arith.addf %14, %15 : vector<16x128xf32>
    %cst_13 = arith.constant 0.000000e+00 : f32
    %17 = vector.broadcast %cst_13 : f32 to vector<16x128xf32>
    %18 = arith.maximumf %16, %17 : vector<16x128xf32>
    %c1 = arith.constant 1 : index
    %c0_14 = arith.constant 0 : index
    %c0_15 = arith.constant 0 : index
    %19 = vector.load %arg4[%c1, %c0_14, %c0_15] : memref<4x128x128xbf16, #tpu.memory_space<vmem>>, vector<1x128x128xbf16>
    %20 = vector.shape_cast %19 : vector<1x128x128xbf16> to vector<128x128xbf16>
    %c1_16 = arith.constant 1 : index
    %c0_17 = arith.constant 0 : index
    %c0_18 = arith.constant 0 : index
    %21 = vector.load %arg5[%c1_16, %c0_17, %c0_18] : memref<4x1x128xf32, #tpu.memory_space<vmem>>, vector<1x1x128xf32>
    %22 = vector.shape_cast %21 : vector<1x1x128xf32> to vector<1x128xf32>
    %23 = arith.truncf %18 : vector<16x128xf32> to vector<16x128xbf16>
    %cst_19 = arith.constant dense<0.000000e+00> : vector<16x128xf32>
    %24 = tpu.matmul %23, %20, %cst_19 {dimension_numbers = #tpu.dot_dimension_numbers<[1], [0], [0], [1], [0, 0, 1, 1], [], []>} : vector<16x128xbf16>, vector<128x128xbf16>, vector<16x128xf32> -> vector<16x128xf32>
    %25 = vector.broadcast %22 : vector<1x128xf32> to vector<16x128xf32>
    %26 = arith.addf %24, %25 : vector<16x128xf32>
    %cst_20 = arith.constant 0.000000e+00 : f32
    %27 = vector.broadcast %cst_20 : f32 to vector<16x128xf32>
    %28 = arith.maximumf %26, %27 : vector<16x128xf32>
    %29 = arith.addf %8, %28 : vector<16x128xf32>
    %c2 = arith.constant 2 : index
    %c0_21 = arith.constant 0 : index
    %c0_22 = arith.constant 0 : index
    %30 = vector.load %arg4[%c2, %c0_21, %c0_22] : memref<4x128x128xbf16, #tpu.memory_space<vmem>>, vector<1x128x128xbf16>
    %31 = vector.shape_cast %30 : vector<1x128x128xbf16> to vector<128x128xbf16>
    %c2_23 = arith.constant 2 : index
    %c0_24 = arith.constant 0 : index
    %c0_25 = arith.constant 0 : index
    %32 = vector.load %arg5[%c2_23, %c0_24, %c0_25] : memref<4x1x128xf32, #tpu.memory_space<vmem>>, vector<1x1x128xf32>
    %33 = vector.shape_cast %32 : vector<1x1x128xf32> to vector<1x128xf32>
    %34 = arith.truncf %29 : vector<16x128xf32> to vector<16x128xbf16>
    %cst_26 = arith.constant dense<0.000000e+00> : vector<16x128xf32>
    %35 = tpu.matmul %34, %31, %cst_26 {dimension_numbers = #tpu.dot_dimension_numbers<[1], [0], [0], [1], [0, 0, 1, 1], [], []>} : vector<16x128xbf16>, vector<128x128xbf16>, vector<16x128xf32> -> vector<16x128xf32>
    %36 = vector.broadcast %33 : vector<1x128xf32> to vector<16x128xf32>
    %37 = arith.addf %35, %36 : vector<16x128xf32>
    %cst_27 = arith.constant 0.000000e+00 : f32
    %38 = vector.broadcast %cst_27 : f32 to vector<16x128xf32>
    %39 = arith.maximumf %37, %38 : vector<16x128xf32>
    %c3 = arith.constant 3 : index
    %c0_28 = arith.constant 0 : index
    %c0_29 = arith.constant 0 : index
    %40 = vector.load %arg4[%c3, %c0_28, %c0_29] : memref<4x128x128xbf16, #tpu.memory_space<vmem>>, vector<1x128x128xbf16>
    %41 = vector.shape_cast %40 : vector<1x128x128xbf16> to vector<128x128xbf16>
    %c3_30 = arith.constant 3 : index
    %c0_31 = arith.constant 0 : index
    %c0_32 = arith.constant 0 : index
    %42 = vector.load %arg5[%c3_30, %c0_31, %c0_32] : memref<4x1x128xf32, #tpu.memory_space<vmem>>, vector<1x1x128xf32>
    %43 = vector.shape_cast %42 : vector<1x1x128xf32> to vector<1x128xf32>
    %44 = arith.truncf %39 : vector<16x128xf32> to vector<16x128xbf16>
    %cst_33 = arith.constant dense<0.000000e+00> : vector<16x128xf32>
    %45 = tpu.matmul %44, %41, %cst_33 {dimension_numbers = #tpu.dot_dimension_numbers<[1], [0], [0], [1], [0, 0, 1, 1], [], []>} : vector<16x128xbf16>, vector<128x128xbf16>, vector<16x128xf32> -> vector<16x128xf32>
    %46 = vector.broadcast %43 : vector<1x128xf32> to vector<16x128xf32>
    %47 = arith.addf %45, %46 : vector<16x128xf32>
    %cst_34 = arith.constant 0.000000e+00 : f32
    %48 = vector.broadcast %cst_34 : f32 to vector<16x128xf32>
    %49 = arith.maximumf %47, %48 : vector<16x128xf32>
    %50 = arith.addf %29, %49 : vector<16x128xf32>
    %c0_35 = arith.constant 0 : index
    %c0_36 = arith.constant 0 : index
    %51 = vector.load %arg6[%c0_35, %c0_36] : memref<128x128xbf16, #tpu.memory_space<vmem>>, vector<128x128xbf16>
    %c0_37 = arith.constant 0 : index
    %c0_38 = arith.constant 0 : index
    %52 = vector.load %arg7[%c0_37, %c0_38] : memref<1x128xf32, #tpu.memory_space<vmem>>, vector<1x128xf32>
    %53 = arith.truncf %50 : vector<16x128xf32> to vector<16x128xbf16>
    %cst_39 = arith.constant dense<0.000000e+00> : vector<16x128xf32>
    %54 = tpu.matmul %53, %51, %cst_39 {dimension_numbers = #tpu.dot_dimension_numbers<[1], [0], [0], [1], [0, 0, 1, 1], [], []>} : vector<16x128xbf16>, vector<128x128xbf16>, vector<16x128xf32> -> vector<16x128xf32>
    %55 = vector.broadcast %52 : vector<1x128xf32> to vector<16x128xf32>
    %56 = arith.addf %54, %55 : vector<16x128xf32>
    %c0_40 = arith.constant 0 : index
    %c0_41 = arith.constant 0 : index
    %57 = vector.load %arg8[%c0_40, %c0_41] : memref<16x128xf32, #tpu.memory_space<vmem>>, vector<16x128xf32>
    tpu.vector_store %arg8[%c0_40, %c0_41], %56 {strides = array<i32>} : memref<16x128xf32, #tpu.memory_space<vmem>>, vector<16x128xf32>,
    return
  }
  func.func @transform_0(%arg0: i32) -> (i32, i32) {
    %c0_i32 = arith.constant 0 : i32
    %c0_i32_0 = arith.constant 0 : i32
    return %arg0, %c0_i32 : i32, i32
  }
  func.func @transform_1(%arg0: i32) -> (i32, i32) {
    %c0_i32 = arith.constant 0 : i32
    %c0_i32_0 = arith.constant 0 : i32
    %c0_i32_1 = arith.constant 0 : i32
    return %c0_i32, %c0_i32_0 : i32, i32
  }
  func.func @transform_2(%arg0: i32) -> (i32, i32) {
    %c0_i32 = arith.constant 0 : i32
    %c0_i32_0 = arith.constant 0 : i32
    %c0_i32_1 = arith.constant 0 : i32
    return %c0_i32, %c0_i32_0 : i32, i32
  }
  func.func @transform_3(%arg0: i32) -> (i32, i32, i32) {
    %c0_i32 = arith.constant 0 : i32
    %c0_i32_0 = arith.constant 0 : i32
    %c0_i32_1 = arith.constant 0 : i32
    %c0_i32_2 = arith.constant 0 : i32
    return %c0_i32, %c0_i32_0, %c0_i32_1 : i32, i32, i32
  }
  func.func @transform_4(%arg0: i32) -> (i32, i32, i32) {
    %c0_i32 = arith.constant 0 : i32
    %c0_i32_0 = arith.constant 0 : i32
    %c0_i32_1 = arith.constant 0 : i32
    %c0_i32_2 = arith.constant 0 : i32
    return %c0_i32, %c0_i32_0, %c0_i32_1 : i32, i32, i32
  }
  func.func @transform_5(%arg0: i32) -> (i32, i32) {
    %c0_i32 = arith.constant 0 : i32
    %c0_i32_0 = arith.constant 0 : i32
    %c0_i32_1 = arith.constant 0 : i32
    return %c0_i32, %c0_i32_0 : i32, i32
  }
  func.func @transform_6(%arg0: i32) -> (i32, i32) {
    %c0_i32 = arith.constant 0 : i32
    %c0_i32_0 = arith.constant 0 : i32
    %c0_i32_1 = arith.constant 0 : i32
    return %c0_i32, %c0_i32_0 : i32, i32
  }
  func.func @transform_7(%arg0: i32) -> (i32, i32) {
    %c0_i32 = arith.constant 0 : i32
    %c0_i32_0 = arith.constant 0 : i32
    return %arg0, %c0_i32 : i32, i32
  }
}

</mosaic_0001>

<llo_original>
// kernel: tpu_custom_call.1
$region0: #{tpu_custom_call.1}
  #allocation0 [shape = 'u32[]', space=smem, size = 0x4, offset = 0x4, fixed_abs, tag = 'smem constant byte address 0x4 - core index']
  #allocation1 [shape = 'u32[144,128]{1,0:T(1,128)}', space=vmem, size = 0x12000, scoped, tag = 'internal scratch']
  %s0 = inlined_call_operand.hbm [shape: f32[16,128], index: 0, kind: input, shape index: {}]
  %s1 = inlined_call_operand.hbm [shape: bf16[128,128], index: 1, kind: input, shape index: {}]
  %s2 = inlined_call_operand.vmem [shape: f32[1,128], index: 2, kind: input, shape index: {}]
  %s3 = inlined_call_operand.hbm [shape: bf16[4,128,128], index: 3, kind: input, shape index: {}]
  %s4 = inlined_call_operand.vmem [shape: f32[4,1,128], index: 4, kind: input, shape index: {}]
  %s5 = inlined_call_operand.hbm [shape: bf16[128,128], index: 5, kind: input, shape index: {}]
  %s6 = inlined_call_operand.vmem [shape: f32[1,128], index: 6, kind: input, shape index: {}]
  %s7 = inlined_call_operand.hbm [shape: f32[16,128], index: 7, kind: output, shape index: {}]
  %s8 = sld [smem:[#allocation0]]
  $region54: #{tpu_custom_call.1} parent=0
    _
  %s10 = ssub.s32 1, %s8
  %s11 = scalar_select 0, %s10, %s8
  $region1: #{tpu_custom_call.1} parent=0
    #allocation2 [shape = 'u8[8192]{0}', space=vmem, size = 0x2000, scoped, tag = 'input window, operand 0, single buffered']
    #allocation3 [shape = 's32[1]{0}', space=sflag, size = 0x4, scoped, tag = 'scoped memory for tpu_custom_call.1']
    #allocation4 [shape = 's32[1]{0}', space=sflag, size = 0x4, scoped, tag = 'scoped memory for tpu_custom_call.1']
    #allocation5 [shape = 'u8[32768]{0}', space=vmem, size = 0x8000, scoped, tag = 'input window, operand 1, single buffered']
    #allocation6 [shape = 's32[1]{0}', space=sflag, size = 0x4, scoped, tag = 'scoped memory for tpu_custom_call.1']
    #allocation7 [shape = 'u8[131072]{0}', space=vmem, size = 0x20000, scoped, tag = 'input window, operand 3, single buffered']
    #allocation8 [shape = 'u8[32768]{0}', space=vmem, size = 0x8000, scoped, tag = 'input window, operand 5, single buffered']
    #allocation9 [shape = 's32[1]{0}', space=sflag, size = 0x4, scoped, tag = 'scoped memory for tpu_custom_call.1']
    #allocation10 [shape = 'u8[8192]{0}', space=vmem, size = 0x2000, scoped, tag = 'output window, operand 0, single buffered']
    %12 = vsyncpa [#allocation3], 0
    %13 = vsyncpa [#allocation6], 0
    %14 = vsyncpa [#allocation9], 0
    %15 = vsyncpa [#allocation4], 0
    // Predicated region
    $region2: #{tpu_custom_call.1} parent=1 // pred_check
      _
    $region3: #{tpu_custom_call.1} parent=1 // pred_check_branch
      %17 = sbr.rel (0) target = $region5
    $region4: #{tpu_custom_call.1} parent=1 // pred_region
      %s19 = ssub.s32 256, 256
      %20 = vsyncadd [#allocation3], %s19
      %s21 = sshll.u32 [#allocation2], 4
      %s22 = int_to_ptr.vmem [resolvable:$true] %s21
      %27 = dma.hbm_to_vmem [thread:$0]  %s0, 256, %s22, [#allocation3], 128, 128, 8
    $region5: #{tpu_custom_call.1} parent=1 // pred_fallthru
      _
    // Predicated region
    $region6: #{tpu_custom_call.1} parent=1 // pred_check
      _
    $region7: #{tpu_custom_call.1} parent=1 // pred_check_branch
      %29 = sbr.rel (0) target = $region9
    $region8: #{tpu_custom_call.1} parent=1 // pred_region
      %s31 = ssub.s32 1024, 1024
      %32 = vsyncadd [#allocation6], %s31
      %s33 = sshll.u32 [#allocation5], 4
      %s34 = int_to_ptr.vmem [resolvable:$true] %s33
      %39 = dma.hbm_to_vmem [thread:$0]  %s1, 1024, %s34, [#allocation6], 64, 64, 4
    $region9: #{tpu_custom_call.1} parent=1 // pred_fallthru
      _
    // Predicated region
    $region10: #{tpu_custom_call.1} parent=1 // pred_check
      _
    $region11: #{tpu_custom_call.1} parent=1 // pred_check_branch
      %41 = sbr.rel (0) target = $region13
    $region12: #{tpu_custom_call.1} parent=1 // pred_region
      _
    $region13: #{tpu_custom_call.1} parent=1 // pred_fallthru
      _
    // Predicated region
    $region14: #{tpu_custom_call.1} parent=1 // pred_check
      _
    $region15: #{tpu_custom_call.1} parent=1 // pred_check_branch
      %43 = sbr.rel (0) target = $region17
    $region16: #{tpu_custom_call.1} parent=1 // pred_region
      %s45 = ssub.s32 4096, 4096
      %46 = vsyncadd [#allocation6], %s45
      %s47 = sshll.u32 [#allocation7], 4
      %s48 = int_to_ptr.vmem [resolvable:$true] %s47
      %53 = dma.hbm_to_vmem [thread:$0]  %s3, 4096, %s48, [#allocation6], 64, 64, 4
    $region17: #{tpu_custom_call.1} parent=1 // pred_fallthru
      _
    // Predicated region
    $region18: #{tpu_custom_call.1} parent=1 // pred_check
      _
    $region19: #{tpu_custom_call.1} parent=1 // pred_check_branch
      %55 = sbr.rel (0) target = $region21
    $region20: #{tpu_custom_call.1} parent=1 // pred_region
      _
    $region21: #{tpu_custom_call.1} parent=1 // pred_fallthru
      _
    // Predicated region
    $region22: #{tpu_custom_call.1} parent=1 // pred_check
      _
    $region23: #{tpu_custom_call.1} parent=1 // pred_check_branch
      %57 = sbr.rel (0) target = $region25
    $region24: #{tpu_custom_call.1} parent=1 // pred_region
      %s59 = ssub.s32 1024, 1024
      %60 = vsyncadd [#allocation9], %s59
      %s61 = sshll.u32 [#allocation8], 4
      %s62 = int_to_ptr.vmem [resolvable:$true] %s61
      %67 = dma.hbm_to_vmem [thread:$0]  %s5, 1024, %s62, [#allocation9], 64, 64, 4
    $region25: #{tpu_custom_call.1} parent=1 // pred_fallthru
      _
    // Predicated region
    $region26: #{tpu_custom_call.1} parent=1 // pred_check
      _
    $region27: #{tpu_custom_call.1} parent=1 // pred_check_branch
      %69 = sbr.rel (0) target = $region29
    $region28: #{tpu_custom_call.1} parent=1 // pred_region
      _
    $region29: #{tpu_custom_call.1} parent=1 // pred_fallthru
      _
    // Predicated region
    $region30: #{tpu_custom_call.1} parent=1 // pred_check
      _
    $region31: #{tpu_custom_call.1} parent=1 // pred_check_branch
      %71 = sbr.rel (0) target = $region33
    $region32: #{tpu_custom_call.1} parent=1 // pred_region
      %72 = dma.done [#allocation3], 256
    $region33: #{tpu_custom_call.1} parent=1 // pred_fallthru
      _
    // Predicated region
    $region34: #{tpu_custom_call.1} parent=1 // pred_check
      _
    $region35: #{tpu_custom_call.1} parent=1 // pred_check_branch
      %74 = sbr.rel (0) target = $region37
    $region36: #{tpu_custom_call.1} parent=1 // pred_region
      %75 = dma.done [#allocation6], 1024
    $region37: #{tpu_custom_call.1} parent=1 // pred_fallthru
      _
    // Predicated region
    $region38: #{tpu_custom_call.1} parent=1 // pred_check
      _
    $region39: #{tpu_custom_call.1} parent=1 // pred_check_branch
      %77 = sbr.rel (0) target = $region41
    $region40: #{tpu_custom_call.1} parent=1 // pred_region
      %78 = dma.done [#allocation6], 4096
    $region41: #{tpu_custom_call.1} parent=1 // pred_fallthru
      _
    // Predicated region
    $region42: #{tpu_custom_call.1} parent=1 // pred_check
      _
    $region43: #{tpu_custom_call.1} parent=1 // pred_check_branch
      %80 = sbr.rel (0) target = $region45
    $region44: #{tpu_custom_call.1} parent=1 // pred_region
      %81 = dma.done [#allocation9], 1024
    $region45: #{tpu_custom_call.1} parent=1 // pred_fallthru
      _
    %v83 = vld [vmem:[#allocation2] sm:$0xff]
    %v84 = vld [vmem:[#allocation2 + $0x8] sm:$0xff]
    %v85 = vld [vmem:[#allocation5] sm:$0xf]
    %v86 = vld [vmem:[#allocation5 + $0x4] sm:$0xf]
    %v87 = vld [vmem:[#allocation5 + $0x8] sm:$0xf]
    %v88 = vld [vmem:[#allocation5 + $0xc] sm:$0xf]
    %v89 = vld [vmem:[#allocation5 + $0x10] sm:$0xf]
    %v90 = vld [vmem:[#allocation5 + $0x14] sm:$0xf]
    %v91 = vld [vmem:[#allocation5 + $0x18] sm:$0xf]
    %v92 = vld [vmem:[#allocation5 + $0x1c] sm:$0xf]
    %v93 = vld [vmem:[#allocation5 + $0x20] sm:$0xf]
    %v94 = vld [vmem:[#allocation5 + $0x24] sm:$0xf]
    %v95 = vld [vmem:[#allocation5 + $0x28] sm:$0xf]
    %v96 = vld [vmem:[#allocation5 + $0x2c] sm:$0xf]
    %v97 = vld [vmem:[#allocation5 + $0x30] sm:$0xf]
    %v98 = vld [vmem:[#allocation5 + $0x34] sm:$0xf]
    %v99 = vld [vmem:[#allocation5 + $0x38] sm:$0xf]
    %v100 = vld [vmem:[#allocation5 + $0x3c] sm:$0xf]
    %v101 = vld [vmem:[%s2] sm:$0x1]
    %v102 = vpack.c.bf16 %v84, %v83
    %v104 = vlaneseq
    %v105 = vshrl.u32 %v104, 7
    %v106 = vsub.s32 0, %v105
    %v107 = vrot.slane %v101, %v106
    %v125 = vunpack.c.l.b16 %v85
    %v126 = vunpack.c.l.b16 %v86
    %v127 = vunpack.c.l.b16 %v87
    %v128 = vunpack.c.l.b16 %v88
    %v129 = vunpack.c.l.b16 %v89
    %v130 = vunpack.c.l.b16 %v90
    %v131 = vunpack.c.l.b16 %v91
    %v132 = vunpack.c.l.b16 %v92
    %v133 = vunpack.c.l.b16 %v93
    %v134 = vunpack.c.l.b16 %v94
    %v135 = vunpack.c.l.b16 %v95
    %v136 = vunpack.c.l.b16 %v96
    %v137 = vunpack.c.l.b16 %v97
    %v138 = vunpack.c.l.b16 %v98
    %v139 = vunpack.c.l.b16 %v99
    %v140 = vunpack.c.l.b16 %v100
    %v141 = vpack.c.b16 %v126, %v125
    %v142 = vpack.c.b16 %v128, %v127
    %v143 = vpack.c.b16 %v130, %v129
    %v144 = vpack.c.b16 %v132, %v131
    %v145 = vpack.c.b16 %v134, %v133
    %v146 = vpack.c.b16 %v136, %v135
    %v147 = vpack.c.b16 %v138, %v137
    %v148 = vpack.c.b16 %v140, %v139
    %157 = vmatprep.subr.bf16.mxu0 0
    %158 = vmatpush1.bf16.msra.mxu0 %v148
    %159 = vmatprep.subr.bf16.mxu0 0
    %160 = vmatpush1.bf16.msra.mxu0 %v147
    %161 = vmatprep.subr.bf16.mxu0 0
    %162 = vmatpush1.bf16.msra.mxu0 %v146
    %163 = vmatprep.subr.bf16.mxu0 0
    %164 = vmatpush1.bf16.msra.mxu0 %v145
    %165 = vmatprep.subr.bf16.mxu0 0
    %166 = vmatpush1.bf16.msra.mxu0 %v144
    %167 = vmatprep.subr.bf16.mxu0 0
    %168 = vmatpush1.bf16.msra.mxu0 %v143
    %169 = vmatprep.subr.bf16.mxu0 0
    %170 = vmatpush1.bf16.msra.mxu0 %v142
    %171 = vmatprep.subr.bf16.mxu0 0
    %172 = vmatpush1.bf16.msra.mxu0 %v141
    %173 = vmatprep.subr.bf16.mxu0 0
    %174 = vmatpush2.bf16.msra.mxu0 0
    %175 = vmatprep.subr.bf16.mxu0 0
    %176 = vmatpush2.bf16.msra.mxu0 0
    %177 = vmatprep.subr.bf16.mxu0 0
    %178 = vmatpush2.bf16.msra.mxu0 0
    %179 = vmatprep.subr.bf16.mxu0 0
    %180 = vmatpush2.bf16.msra.mxu0 0
    %181 = vmatprep.subr.bf16.mxu0 0
    %182 = vmatpush2.bf16.msra.mxu0 0
    %183 = vmatprep.subr.bf16.mxu0 0
    %184 = vmatpush2.bf16.msra.mxu0 0
    %185 = vmatprep.subr.bf16.mxu0 0
    %186 = vmatpush2.bf16.msra.mxu0 0
    %187 = vmatprep.subr.bf16.mxu0 0
    %188 = vmatpush2.bf16.msra.mxu0 0
    %189 = vmatprep.mubr.bf16.mxu0 0
    %190 = vmatmul.mubr.bf16.gmra.mxu0 %v102
    %v191 = vpop.f32.mrf.mxu0
    %v192 = vadd.f32 %v107, %v191
    %v193 = vpop.f32.mrf.mxu0
    %v194 = vpop.f32.mrf.mxu0
    %v195 = vadd.f32 %v107, %v194
    %v196 = vpop.f32.mrf.mxu0
    %197 = vdwg.mxu0
    %v198 = vmax.f32 %v192, 0.0
    %v199 = vmax.f32 %v195, 0.0
    %v200 = vld [vmem:[#allocation7] sm:$0xf]
    %v201 = vld [vmem:[#allocation7 + $0x4] sm:$0xf]
    %v202 = vld [vmem:[#allocation7 + $0x8] sm:$0xf]
    %v203 = vld [vmem:[#allocation7 + $0xc] sm:$0xf]
    %v204 = vld [vmem:[#allocation7 + $0x10] sm:$0xf]
    %v205 = vld [vmem:[#allocation7 + $0x14] sm:$0xf]
    %v206 = vld [vmem:[#allocation7 + $0x18] sm:$0xf]
    %v207 = vld [vmem:[#allocation7 + $0x1c] sm:$0xf]
    %v208 = vld [vmem:[#allocation7 + $0x20] sm:$0xf]
    %v209 = vld [vmem:[#allocation7 + $0x24] sm:$0xf]
    %v210 = vld [vmem:[#allocation7 + $0x28] sm:$0xf]
    %v211 = vld [vmem:[#allocation7 + $0x2c] sm:$0xf]
    %v212 = vld [vmem:[#allocation7 + $0x30] sm:$0xf]
    %v213 = vld [vmem:[#allocation7 + $0x34] sm:$0xf]
    %v214 = vld [vmem:[#allocation7 + $0x38] sm:$0xf]
    %v215 = vld [vmem:[#allocation7 + $0x3c] sm:$0xf]
    %v216 = vld [vmem:[%s4] sm:$0x1]
    %v217 = vpack.c.bf16 %v199, %v198
    %v219 = vlaneseq
    %v220 = vshrl.u32 %v219, 7
    %v221 = vsub.s32 0, %v220
    %v222 = vrot.slane %v216, %v221
    %v240 = vunpack.c.l.b16 %v200
    %v241 = vunpack.c.l.b16 %v201
    %v242 = vunpack.c.l.b16 %v202
    %v243 = vunpack.c.l.b16 %v203
    %v244 = vunpack.c.l.b16 %v204
    %v245 = vunpack.c.l.b16 %v205
    %v246 = vunpack.c.l.b16 %v206
    %v247 = vunpack.c.l.b16 %v207
    %v248 = vunpack.c.l.b16 %v208
    %v249 = vunpack.c.l.b16 %v209
    %v250 = vunpack.c.l.b16 %v210
    %v251 = vunpack.c.l.b16 %v211
    %v252 = vunpack.c.l.b16 %v212
    %v253 = vunpack.c.l.b16 %v213
    %v254 = vunpack.c.l.b16 %v214
    %v255 = vunpack.c.l.b16 %v215
    %v256 = vpack.c.b16 %v241, %v240
    %v257 = vpack.c.b16 %v243, %v242
    %v258 = vpack.c.b16 %v245, %v244
    %v259 = vpack.c.b16 %v247, %v246
    %v260 = vpack.c.b16 %v249, %v248
    %v261 = vpack.c.b16 %v251, %v250
    %v262 = vpack.c.b16 %v253, %v252
    %v263 = vpack.c.b16 %v255, %v254
    %272 = vmatprep.subr.bf16.mxu0 0
    %273 = vmatpush1.bf16.msra.mxu0 %v263
    %274 = vmatprep.subr.bf16.mxu0 0
    %275 = vmatpush1.bf16.msra.mxu0 %v262
    %276 = vmatprep.subr.bf16.mxu0 0
    %277 = vmatpush1.bf16.msra.mxu0 %v261
    %278 = vmatprep.subr.bf16.mxu0 0
    %279 = vmatpush1.bf16.msra.mxu0 %v260
    %280 = vmatprep.subr.bf16.mxu0 0
    %281 = vmatpush1.bf16.msra.mxu0 %v259
    %282 = vmatprep.subr.bf16.mxu0 0
    %283 = vmatpush1.bf16.msra.mxu0 %v258
    %284 = vmatprep.subr.bf16.mxu0 0
    %285 = vmatpush1.bf16.msra.mxu0 %v257
    %286 = vmatprep.subr.bf16.mxu0 0
    %287 = vmatpush1.bf16.msra.mxu0 %v256
    %288 = vmatprep.subr.bf16.mxu0 0
    %289 = vmatpush2.bf16.msra.mxu0 0
    %290 = vmatprep.subr.bf16.mxu0 0
    %291 = vmatpush2.bf16.msra.mxu0 0
    %292 = vmatprep.subr.bf16.mxu0 0
    %293 = vmatpush2.bf16.msra.mxu0 0
    %294 = vmatprep.subr.bf16.mxu0 0
    %295 = vmatpush2.bf16.msra.mxu0 0
    %296 = vmatprep.subr.bf16.mxu0 0
    %297 = vmatpush2.bf16.msra.mxu0 0
    %298 = vmatprep.subr.bf16.mxu0 0
    %299 = vmatpush2.bf16.msra.mxu0 0
    %300 = vmatprep.subr.bf16.mxu0 0
    %301 = vmatpush2.bf16.msra.mxu0 0
    %302 = vmatprep.subr.bf16.mxu0 0
    %303 = vmatpush2.bf16.msra.mxu0 0
    %304 = vmatprep.mubr.bf16.mxu0 0
    %305 = vmatmul.mubr.bf16.gmra.mxu0 %v217
    %v306 = vpop.f32.mrf.mxu0
    %v307 = vadd.f32 %v222, %v306
    %v308 = vpop.f32.mrf.mxu0
    %v309 = vpop.f32.mrf.mxu0
    %v310 = vadd.f32 %v222, %v309
    %v311 = vpop.f32.mrf.mxu0
    %312 = vdwg.mxu0
    %v313 = vmax.f32 %v307, 0.0
    %v314 = vmax.f32 %v310, 0.0
    %s315 = scalar_lea.vmem [#allocation7], 64
    %v316 = vld [vmem:[%s315] sm:$0xf]
    %v317 = vld [vmem:[%s315 + $0x4] sm:$0xf]
    %v318 = vld [vmem:[%s315 + $0x8] sm:$0xf]
    %v319 = vld [vmem:[%s315 + $0xc] sm:$0xf]
    %v320 = vld [vmem:[%s315 + $0x10] sm:$0xf]
    %v321 = vld [vmem:[%s315 + $0x14] sm:$0xf]
    %v322 = vld [vmem:[%s315 + $0x18] sm:$0xf]
    %v323 = vld [vmem:[%s315 + $0x1c] sm:$0xf]
    %v324 = vld [vmem:[%s315 + $0x20] sm:$0xf]
    %v325 = vld [vmem:[%s315 + $0x24] sm:$0xf]
    %v326 = vld [vmem:[%s315 + $0x28] sm:$0xf]
    %v327 = vld [vmem:[%s315 + $0x2c] sm:$0xf]
    %v328 = vld [vmem:[%s315 + $0x30] sm:$0xf]
    %v329 = vld [vmem:[%s315 + $0x34] sm:$0xf]
    %v330 = vld [vmem:[%s315 + $0x38] sm:$0xf]
    %v331 = vld [vmem:[%s315 + $0x3c] sm:$0xf]
    %s332 = scalar_lea.vmem %s4, 1
    %v333 = vld [vmem:[%s332] sm:$0x1]
    %v334 = vpack.c.bf16 %v314, %v313
    %v336 = vlaneseq
    %v337 = vshrl.u32 %v336, 7
    %v338 = vsub.s32 0, %v337
    %v339 = vrot.slane %v333, %v338
    %v357 = vunpack.c.l.b16 %v316
    %v358 = vunpack.c.l.b16 %v317
    %v359 = vunpack.c.l.b16 %v318
    %v360 = vunpack.c.l.b16 %v319
    %v361 = vunpack.c.l.b16 %v320
    %v362 = vunpack.c.l.b16 %v321
    %v363 = vunpack.c.l.b16 %v322
    %v364 = vunpack.c.l.b16 %v323
    %v365 = vunpack.c.l.b16 %v324
    %v366 = vunpack.c.l.b16 %v325
    %v367 = vunpack.c.l.b16 %v326
    %v368 = vunpack.c.l.b16 %v327
    %v369 = vunpack.c.l.b16 %v328
    %v370 = vunpack.c.l.b16 %v329
    %v371 = vunpack.c.l.b16 %v330
    %v372 = vunpack.c.l.b16 %v331
    %v373 = vpack.c.b16 %v358, %v357
    %v374 = vpack.c.b16 %v360, %v359
    %v375 = vpack.c.b16 %v362, %v361
    %v376 = vpack.c.b16 %v364, %v363
    %v377 = vpack.c.b16 %v366, %v365
    %v378 = vpack.c.b16 %v368, %v367
    %v379 = vpack.c.b16 %v370, %v369
    %v380 = vpack.c.b16 %v372, %v371
    %389 = vmatprep.subr.bf16.mxu0 0
    %390 = vmatpush1.bf16.msra.mxu0 %v380
    %391 = vmatprep.subr.bf16.mxu0 0
    %392 = vmatpush1.bf16.msra.mxu0 %v379
    %393 = vmatprep.subr.bf16.mxu0 0
    %394 = vmatpush1.bf16.msra.mxu0 %v378
    %395 = vmatprep.subr.bf16.mxu0 0
    %396 = vmatpush1.bf16.msra.mxu0 %v377
    %397 = vmatprep.subr.bf16.mxu0 0
    %398 = vmatpush1.bf16.msra.mxu0 %v376
    %399 = vmatprep.subr.bf16.mxu0 0
    %400 = vmatpush1.bf16.msra.mxu0 %v375
    %401 = vmatprep.subr.bf16.mxu0 0
    %402 = vmatpush1.bf16.msra.mxu0 %v374
    %403 = vmatprep.subr.bf16.mxu0 0
    %404 = vmatpush1.bf16.msra.mxu0 %v373
    %405 = vmatprep.subr.bf16.mxu0 0
    %406 = vmatpush2.bf16.msra.mxu0 0
    %407 = vmatprep.subr.bf16.mxu0 0
    %408 = vmatpush2.bf16.msra.mxu0 0
    %409 = vmatprep.subr.bf16.mxu0 0
    %410 = vmatpush2.bf16.msra.mxu0 0
    %411 = vmatprep.subr.bf16.mxu0 0
    %412 = vmatpush2.bf16.msra.mxu0 0
    %413 = vmatprep.subr.bf16.mxu0 0
    %414 = vmatpush2.bf16.msra.mxu0 0
    %415 = vmatprep.subr.bf16.mxu0 0
    %416 = vmatpush2.bf16.msra.mxu0 0
    %417 = vmatprep.subr.bf16.mxu0 0
    %418 = vmatpush2.bf16.msra.mxu0 0
    %419 = vmatprep.subr.bf16.mxu0 0
    %420 = vmatpush2.bf16.msra.mxu0 0
    %421 = vmatprep.mubr.bf16.mxu0 0
    %422 = vmatmul.mubr.bf16.gmra.mxu0 %v334
    %v423 = vpop.f32.mrf.mxu0
    %v424 = vadd.f32 %v339, %v423
    %v425 = vpop.f32.mrf.mxu0
    %v426 = vpop.f32.mrf.mxu0
    %v427 = vadd.f32 %v339, %v426
    %v428 = vpop.f32.mrf.mxu0
    %429 = vdwg.mxu0
    %v430 = vmax.f32 %v424, 0.0
    %v431 = vmax.f32 %v427, 0.0
    %v432 = vadd.f32 %v198, %v430
    %v433 = vadd.f32 %v199, %v431
    %s434 = scalar_lea.vmem [#allocation7], 128
    %v435 = vld [vmem:[%s434] sm:$0xf]
    %v436 = vld [vmem:[%s434 + $0x4] sm:$0xf]
    %v437 = vld [vmem:[%s434 + $0x8] sm:$0xf]
    %v438 = vld [vmem:[%s434 + $0xc] sm:$0xf]
    %v439 = vld [vmem:[%s434 + $0x10] sm:$0xf]
    %v440 = vld [vmem:[%s434 + $0x14] sm:$0xf]
    %v441 = vld [vmem:[%s434 + $0x18] sm:$0xf]
    %v442 = vld [vmem:[%s434 + $0x1c] sm:$0xf]
    %v443 = vld [vmem:[%s434 + $0x20] sm:$0xf]
    %v444 = vld [vmem:[%s434 + $0x24] sm:$0xf]
    %v445 = vld [vmem:[%s434 + $0x28] sm:$0xf]
    %v446 = vld [vmem:[%s434 + $0x2c] sm:$0xf]
    %v447 = vld [vmem:[%s434 + $0x30] sm:$0xf]
    %v448 = vld [vmem:[%s434 + $0x34] sm:$0xf]
    %v449 = vld [vmem:[%s434 + $0x38] sm:$0xf]
    %v450 = vld [vmem:[%s434 + $0x3c] sm:$0xf]
    %s451 = scalar_lea.vmem %s4, 2
    %v452 = vld [vmem:[%s451] sm:$0x1]
    %v453 = vpack.c.bf16 %v433, %v432
    %v455 = vlaneseq
    %v456 = vshrl.u32 %v455, 7
    %v457 = vsub.s32 0, %v456
    %v458 = vrot.slane %v452, %v457
    %v476 = vunpack.c.l.b16 %v435
    %v477 = vunpack.c.l.b16 %v436
    %v478 = vunpack.c.l.b16 %v437
    %v479 = vunpack.c.l.b16 %v438
    %v480 = vunpack.c.l.b16 %v439
    %v481 = vunpack.c.l.b16 %v440
    %v482 = vunpack.c.l.b16 %v441
    %v483 = vunpack.c.l.b16 %v442
    %v484 = vunpack.c.l.b16 %v443
    %v485 = vunpack.c.l.b16 %v444
    %v486 = vunpack.c.l.b16 %v445
    %v487 = vunpack.c.l.b16 %v446
    %v488 = vunpack.c.l.b16 %v447
    %v489 = vunpack.c.l.b16 %v448
    %v490 = vunpack.c.l.b16 %v449
    %v491 = vunpack.c.l.b16 %v450
    %v492 = vpack.c.b16 %v477, %v476
    %v493 = vpack.c.b16 %v479, %v478
    %v494 = vpack.c.b16 %v481, %v480
    %v495 = vpack.c.b16 %v483, %v482
    %v496 = vpack.c.b16 %v485, %v484
    %v497 = vpack.c.b16 %v487, %v486
    %v498 = vpack.c.b16 %v489, %v488
    %v499 = vpack.c.b16 %v491, %v490
    %508 = vmatprep.subr.bf16.mxu0 0
    %509 = vmatpush1.bf16.msra.mxu0 %v499
    %510 = vmatprep.subr.bf16.mxu0 0
    %511 = vmatpush1.bf16.msra.mxu0 %v498
    %512 = vmatprep.subr.bf16.mxu0 0
    %513 = vmatpush1.bf16.msra.mxu0 %v497
    %514 = vmatprep.subr.bf16.mxu0 0
    %515 = vmatpush1.bf16.msra.mxu0 %v496
    %516 = vmatprep.subr.bf16.mxu0 0
    %517 = vmatpush1.bf16.msra.mxu0 %v495
    %518 = vmatprep.subr.bf16.mxu0 0
    %519 = vmatpush1.bf16.msra.mxu0 %v494
    %520 = vmatprep.subr.bf16.mxu0 0
    %521 = vmatpush1.bf16.msra.mxu0 %v493
    %522 = vmatprep.subr.bf16.mxu0 0
    %523 = vmatpush1.bf16.msra.mxu0 %v492
    %524 = vmatprep.subr.bf16.mxu0 0
    %525 = vmatpush2.bf16.msra.mxu0 0
    %526 = vmatprep.subr.bf16.mxu0 0
    %527 = vmatpush2.bf16.msra.mxu0 0
    %528 = vmatprep.subr.bf16.mxu0 0
    %529 = vmatpush2.bf16.msra.mxu0 0
    %530 = vmatprep.subr.bf16.mxu0 0
    %531 = vmatpush2.bf16.msra.mxu0 0
    %532 = vmatprep.subr.bf16.mxu0 0
    %533 = vmatpush2.bf16.msra.mxu0 0
    %534 = vmatprep.subr.bf16.mxu0 0
    %535 = vmatpush2.bf16.msra.mxu0 0
    %536 = vmatprep.subr.bf16.mxu0 0
    %537 = vmatpush2.bf16.msra.mxu0 0
    %538 = vmatprep.subr.bf16.mxu0 0
    %539 = vmatpush2.bf16.msra.mxu0 0
    %540 = vmatprep.mubr.bf16.mxu0 0
    %541 = vmatmul.mubr.bf16.gmra.mxu0 %v453
    %v542 = vpop.f32.mrf.mxu0
    %v543 = vadd.f32 %v458, %v542
    %v544 = vpop.f32.mrf.mxu0
    %v545 = vpop.f32.mrf.mxu0
    %v546 = vadd.f32 %v458, %v545
    %v547 = vpop.f32.mrf.mxu0
    %548 = vdwg.mxu0
    %v549 = vmax.f32 %v543, 0.0
    %v550 = vmax.f32 %v546, 0.0
    %s551 = scalar_lea.vmem [#allocation7], 192
    %v552 = vld [vmem:[%s551] sm:$0xf]
    %v553 = vld [vmem:[%s551 + $0x4] sm:$0xf]
    %v554 = vld [vmem:[%s551 + $0x8] sm:$0xf]
    %v555 = vld [vmem:[%s551 + $0xc] sm:$0xf]
    %v556 = vld [vmem:[%s551 + $0x10] sm:$0xf]
    %v557 = vld [vmem:[%s551 + $0x14] sm:$0xf]
    %v558 = vld [vmem:[%s551 + $0x18] sm:$0xf]
    %v559 = vld [vmem:[%s551 + $0x1c] sm:$0xf]
    %v560 = vld [vmem:[%s551 + $0x20] sm:$0xf]
    %v561 = vld [vmem:[%s551 + $0x24] sm:$0xf]
    %v562 = vld [vmem:[%s551 + $0x28] sm:$0xf]
    %v563 = vld [vmem:[%s551 + $0x2c] sm:$0xf]
    %v564 = vld [vmem:[%s551 + $0x30] sm:$0xf]
    %v565 = vld [vmem:[%s551 + $0x34] sm:$0xf]
    %v566 = vld [vmem:[%s551 + $0x38] sm:$0xf]
    %v567 = vld [vmem:[%s551 + $0x3c] sm:$0xf]
    %s568 = scalar_lea.vmem %s4, 3
    %v569 = vld [vmem:[%s568] sm:$0x1]
    %v570 = vpack.c.bf16 %v550, %v549
    %v572 = vlaneseq
    %v573 = vshrl.u32 %v572, 7
    %v574 = vsub.s32 0, %v573
    %v575 = vrot.slane %v569, %v574
    %v593 = vunpack.c.l.b16 %v552
    %v594 = vunpack.c.l.b16 %v553
    %v595 = vunpack.c.l.b16 %v554
    %v596 = vunpack.c.l.b16 %v555
    %v597 = vunpack.c.l.b16 %v556
    %v598 = vunpack.c.l.b16 %v557
    %v599 = vunpack.c.l.b16 %v558
    %v600 = vunpack.c.l.b16 %v559
    %v601 = vunpack.c.l.b16 %v560
    %v602 = vunpack.c.l.b16 %v561
    %v603 = vunpack.c.l.b16 %v562
    %v604 = vunpack.c.l.b16 %v563
    %v605 = vunpack.c.l.b16 %v564
    %v606 = vunpack.c.l.b16 %v565
    %v607 = vunpack.c.l.b16 %v566
    %v608 = vunpack.c.l.b16 %v567
    %v609 = vpack.c.b16 %v594, %v593
    %v610 = vpack.c.b16 %v596, %v595
    %v611 = vpack.c.b16 %v598, %v597
    %v612 = vpack.c.b16 %v600, %v599
    %v613 = vpack.c.b16 %v602, %v601
    %v614 = vpack.c.b16 %v604, %v603
    %v615 = vpack.c.b16 %v606, %v605
    %v616 = vpack.c.b16 %v608, %v607
    %625 = vmatprep.subr.bf16.mxu0 0
    %626 = vmatpush1.bf16.msra.mxu0 %v616
    %627 = vmatprep.subr.bf16.mxu0 0
    %628 = vmatpush1.bf16.msra.mxu0 %v615
    %629 = vmatprep.subr.bf16.mxu0 0
    %630 = vmatpush1.bf16.msra.mxu0 %v614
    %631 = vmatprep.subr.bf16.mxu0 0
    %632 = vmatpush1.bf16.msra.mxu0 %v613
    %633 = vmatprep.subr.bf16.mxu0 0
    %634 = vmatpush1.bf16.msra.mxu0 %v612
    %635 = vmatprep.subr.bf16.mxu0 0
    %636 = vmatpush1.bf16.msra.mxu0 %v611
    %637 = vmatprep.subr.bf16.mxu0 0
    %638 = vmatpush1.bf16.msra.mxu0 %v610
    %639 = vmatprep.subr.bf16.mxu0 0
    %640 = vmatpush1.bf16.msra.mxu0 %v609
    %641 = vmatprep.subr.bf16.mxu0 0
    %642 = vmatpush2.bf16.msra.mxu0 0
    %643 = vmatprep.subr.bf16.mxu0 0
    %644 = vmatpush2.bf16.msra.mxu0 0
    %645 = vmatprep.subr.bf16.mxu0 0
    %646 = vmatpush2.bf16.msra.mxu0 0
    %647 = vmatprep.subr.bf16.mxu0 0
    %648 = vmatpush2.bf16.msra.mxu0 0
    %649 = vmatprep.subr.bf16.mxu0 0
    %650 = vmatpush2.bf16.msra.mxu0 0
    %651 = vmatprep.subr.bf16.mxu0 0
    %652 = vmatpush2.bf16.msra.mxu0 0
    %653 = vmatprep.subr.bf16.mxu0 0
    %654 = vmatpush2.bf16.msra.mxu0 0
    %655 = vmatprep.subr.bf16.mxu0 0
    %656 = vmatpush2.bf16.msra.mxu0 0
    %657 = vmatprep.mubr.bf16.mxu0 0
    %658 = vmatmul.mubr.bf16.gmra.mxu0 %v570
    %v659 = vpop.f32.mrf.mxu0
    %v660 = vadd.f32 %v575, %v659
    %v661 = vpop.f32.mrf.mxu0
    %v662 = vpop.f32.mrf.mxu0
    %v663 = vadd.f32 %v575, %v662
    %v664 = vpop.f32.mrf.mxu0
    %665 = vdwg.mxu0
    %v666 = vmax.f32 %v660, 0.0
    %v667 = vmax.f32 %v663, 0.0
    %v668 = vadd.f32 %v432, %v666
    %v669 = vadd.f32 %v433, %v667
    %v670 = vld [vmem:[#allocation8] sm:$0xf]
    %v671 = vld [vmem:[#allocation8 + $0x4] sm:$0xf]
    %v672 = vld [vmem:[#allocation8 + $0x8] sm:$0xf]
    %v673 = vld [vmem:[#allocation8 + $0xc] sm:$0xf]
    %v674 = vld [vmem:[#allocation8 + $0x10] sm:$0xf]
    %v675 = vld [vmem:[#allocation8 + $0x14] sm:$0xf]
    %v676 = vld [vmem:[#allocation8 + $0x18] sm:$0xf]
    %v677 = vld [vmem:[#allocation8 + $0x1c] sm:$0xf]
    %v678 = vld [vmem:[#allocation8 + $0x20] sm:$0xf]
    %v679 = vld [vmem:[#allocation8 + $0x24] sm:$0xf]
    %v680 = vld [vmem:[#allocation8 + $0x28] sm:$0xf]
    %v681 = vld [vmem:[#allocation8 + $0x2c] sm:$0xf]
    %v682 = vld [vmem:[#allocation8 + $0x30] sm:$0xf]
    %v683 = vld [vmem:[#allocation8 + $0x34] sm:$0xf]
    %v684 = vld [vmem:[#allocation8 + $0x38] sm:$0xf]
    %v685 = vld [vmem:[#allocation8 + $0x3c] sm:$0xf]
    %v686 = vld [vmem:[%s6] sm:$0x1]
    %v687 = vpack.c.bf16 %v669, %v668
    %v689 = vlaneseq
    %v690 = vshrl.u32 %v689, 7
    %v691 = vsub.s32 0, %v690
    %v692 = vrot.slane %v686, %v691
    %v710 = vunpack.c.l.b16 %v670
    %v711 = vunpack.c.l.b16 %v671
    %v712 = vunpack.c.l.b16 %v672
    %v713 = vunpack.c.l.b16 %v673
    %v714 = vunpack.c.l.b16 %v674
    %v715 = vunpack.c.l.b16 %v675
    %v716 = vunpack.c.l.b16 %v676
    %v717 = vunpack.c.l.b16 %v677
    %v718 = vunpack.c.l.b16 %v678
    %v719 = vunpack.c.l.b16 %v679
    %v720 = vunpack.c.l.b16 %v680
    %v721 = vunpack.c.l.b16 %v681
    %v722 = vunpack.c.l.b16 %v682
    %v723 = vunpack.c.l.b16 %v683
    %v724 = vunpack.c.l.b16 %v684
    %v725 = vunpack.c.l.b16 %v685
    %v726 = vpack.c.b16 %v711, %v710
    %v727 = vpack.c.b16 %v713, %v712
    %v728 = vpack.c.b16 %v715, %v714
    %v729 = vpack.c.b16 %v717, %v716
    %v730 = vpack.c.b16 %v719, %v718
    %v731 = vpack.c.b16 %v721, %v720
    %v732 = vpack.c.b16 %v723, %v722
    %v733 = vpack.c.b16 %v725, %v724
    %742 = vmatprep.subr.bf16.mxu0 0
    %743 = vmatpush1.bf16.msra.mxu0 %v733
    %744 = vmatprep.subr.bf16.mxu0 0
    %745 = vmatpush1.bf16.msra.mxu0 %v732
    %746 = vmatprep.subr.bf16.mxu0 0
    %747 = vmatpush1.bf16.msra.mxu0 %v731
    %748 = vmatprep.subr.bf16.mxu0 0
    %749 = vmatpush1.bf16.msra.mxu0 %v730
    %750 = vmatprep.subr.bf16.mxu0 0
    %751 = vmatpush1.bf16.msra.mxu0 %v729
    %752 = vmatprep.subr.bf16.mxu0 0
    %753 = vmatpush1.bf16.msra.mxu0 %v728
    %754 = vmatprep.subr.bf16.mxu0 0
    %755 = vmatpush1.bf16.msra.mxu0 %v727
    %756 = vmatprep.subr.bf16.mxu0 0
    %757 = vmatpush1.bf16.msra.mxu0 %v726
    %758 = vmatprep.subr.bf16.mxu0 0
    %759 = vmatpush2.bf16.msra.mxu0 0
    %760 = vmatprep.subr.bf16.mxu0 0
    %761 = vmatpush2.bf16.msra.mxu0 0
    %762 = vmatprep.subr.bf16.mxu0 0
    %763 = vmatpush2.bf16.msra.mxu0 0
    %764 = vmatprep.subr.bf16.mxu0 0
    %765 = vmatpush2.bf16.msra.mxu0 0
    %766 = vmatprep.subr.bf16.mxu0 0
    %767 = vmatpush2.bf16.msra.mxu0 0
    %768 = vmatprep.subr.bf16.mxu0 0
    %769 = vmatpush2.bf16.msra.mxu0 0
    %770 = vmatprep.subr.bf16.mxu0 0
    %771 = vmatpush2.bf16.msra.mxu0 0
    %772 = vmatprep.subr.bf16.mxu0 0
    %773 = vmatpush2.bf16.msra.mxu0 0
    %774 = vmatprep.mubr.bf16.mxu0 0
    %775 = vmatmul.mubr.bf16.gmra.mxu0 %v687
    %v776 = vpop.f32.mrf.mxu0
    %v777 = vadd.f32 %v692, %v776
    %v778 = vpop.f32.mrf.mxu0
    %v779 = vpop.f32.mrf.mxu0
    %v780 = vadd.f32 %v692, %v779
    %v781 = vpop.f32.mrf.mxu0
    %782 = vdwg.mxu0
    %783 = vst [vmem:[#allocation10] sm:$0xff] %v777
    %784 = vst [vmem:[#allocation10 + $0x8] sm:$0xff] %v780
    // Predicated region
    $region46: #{tpu_custom_call.1} parent=1 // pred_check
      _
    $region47: #{tpu_custom_call.1} parent=1 // pred_check_branch
      %786 = sbr.rel (0) target = $region49
    $region48: #{tpu_custom_call.1} parent=1 // pred_region
      %s788 = ssub.s32 256, 256
      %789 = vsyncadd [#allocation4], %s788
      %s790 = sshll.u32 [#allocation10], 4
      %s791 = int_to_ptr.vmem [resolvable:$true] %s790
      %796 = dma.vmem_to_hbm [thread:$0]  %s791, 256, %s7, [#allocation4], 128, 128, 8
    $region49: #{tpu_custom_call.1} parent=1 // pred_fallthru
      _
    // Predicated region
    $region50: #{tpu_custom_call.1} parent=1 // pred_check
      _
    $region51: #{tpu_custom_call.1} parent=1 // pred_check_branch
      %798 = sbr.rel (0) target = $region53
    $region52: #{tpu_custom_call.1} parent=1 // pred_region
      %799 = dma.done [#allocation4], 256
    $region53: #{tpu_custom_call.1} parent=1 // pred_fallthru
      _
    %800 = vsyncpa [#allocation3], 1
    %801 = vsyncpa [#allocation6], 1
    %802 = vsyncpa [#allocation9], 1
    %803 = vsyncpa [#allocation4], 1

// kernel: tpu_custom_call.1
$region0: #{tpu_custom_call.1}
  #allocation0 [shape = 'u32[]', space=smem, size = 0x4, offset = 0x4, fixed_abs, tag = 'smem constant byte address 0x4 - core index']
  #allocation1 [shape = 'u32[144,128]{1,0:T(1,128)}', space=vmem, size = 0x12000, scoped, tag = 'internal scratch']
  %s0 = inlined_call_operand.hbm [shape: f32[16,128], index: 0, kind: input, shape index: {}]
  %s1 = inlined_call_operand.hbm [shape: bf16[128,128], index: 1, kind: input, shape index: {}]
  %s2 = inlined_call_operand.vmem [shape: f32[1,128], index: 2, kind: input, shape index: {}]
  %s3 = inlined_call_operand.hbm [shape: bf16[4,128,128], index: 3, kind: input, shape index: {}]
  %s4 = inlined_call_operand.vmem [shape: f32[4,1,128], index: 4, kind: input, shape index: {}]
  %s5 = inlined_call_operand.hbm [shape: bf16[128,128], index: 5, kind: input, shape index: {}]
  %s6 = inlined_call_operand.vmem [shape: f32[1,128], index: 6, kind: input, shape index: {}]
  %s7 = inlined_call_operand.hbm [shape: f32[16,128], index: 7, kind: output, shape index: {}]
  %s8 = sld [smem:[#allocation0]]
  $region54: #{tpu_custom_call.1} parent=0
    _
  %s10 = ssub.s32 1, %s8
  %s11 = scalar_select 0, %s10, %s8
  $region1: #{tpu_custom_call.1} parent=0
    #allocation2 [shape = 'u8[8192]{0}', space=vmem, size = 0x2000, scoped, tag = 'input window, operand 0, single buffered']
    #allocation3 [shape = 's32[1]{0}', space=sflag, size = 0x4, scoped, tag = 'scoped memory for tpu_custom_call.1']
    #allocation4 [shape = 's32[1]{0}', space=sflag, size = 0x4, scoped, tag = 'scoped memory for tpu_custom_call.1']
    #allocation5 [shape = 'u8[32768]{0}', space=vmem, size = 0x8000, scoped, tag = 'input window, operand 1, single buffered']
    #allocation6 [shape = 's32[1]{0}', space=sflag, size = 0x4, scoped, tag = 'scoped memory for tpu_custom_call.1']
    #allocation7 [shape = 'u8[131072]{0}', space=vmem, size = 0x20000, scoped, tag = 'input window, operand 3, single buffered']
    #allocation8 [shape = 'u8[32768]{0}', space=vmem, size = 0x8000, scoped, tag = 'input window, operand 5, single buffered']
    #allocation9 [shape = 's32[1]{0}', space=sflag, size = 0x4, scoped, tag = 'scoped memory for tpu_custom_call.1']
    #allocation10 [shape = 'u8[8192]{0}', space=vmem, size = 0x2000, scoped, tag = 'output window, operand 0, single buffered']
    %12 = vsyncpa [#allocation3], 0
    %13 = vsyncpa [#allocation6], 0
    %14 = vsyncpa [#allocation9], 0
    %15 = vsyncpa [#allocation4], 0
    // Predicated region
    $region2: #{tpu_custom_call.1} parent=1 // pred_check
      _
    $region3: #{tpu_custom_call.1} parent=1 // pred_check_branch
      %17 = sbr.rel (0) target = $region5
    $region4: #{tpu_custom_call.1} parent=1 // pred_region
      %s19 = ssub.s32 256, 256
      %20 = vsyncadd [#allocation3], %s19
      %s21 = sshll.u32 [#allocation2], 4
      %s22 = int_to_ptr.vmem [resolvable:$true] %s21
      %27 = dma.hbm_to_vmem [thread:$0]  %s0, 256, %s22, [#allocation3], 128, 128, 8
    $region5: #{tpu_custom_call.1} parent=1 // pred_fallthru
      _
    // Predicated region
    $region6: #{tpu_custom_call.1} parent=1 // pred_check
      _
    $region7: #{tpu_custom_call.1} parent=1 // pred_check_branch
      %29 = sbr.rel (0) target = $region9
    $region8: #{tpu_custom_call.1} parent=1 // pred_region
      %s31 = ssub.s32 1024, 1024
      %32 = vsyncadd [#allocation6], %s31
      %s33 = sshll.u32 [#allocation5], 4
      %s34 = int_to_ptr.vmem [resolvable:$true] %s33
      %39 = dma.hbm_to_vmem [thread:$0]  %s1, 1024, %s34, [#allocation6], 64, 64, 4
    $region9: #{tpu_custom_call.1} parent=1 // pred_fallthru
      _
    // Predicated region
    $region10: #{tpu_custom_call.1} parent=1 // pred_check
      _
    $region11: #{tpu_custom_call.1} parent=1 // pred_check_branch
      %41 = sbr.rel (0) target = $region13
    $region12: #{tpu_custom_call.1} parent=1 // pred_region
      _
    $region13: #{tpu_custom_call.1} parent=1 // pred_fallthru
      _
    // Predicated region
    $region14: #{tpu_custom_call.1} parent=1 // pred_check
      _
    $region15: #{tpu_custom_call.1} parent=1 // pred_check_branch
      %43 = sbr.rel (0) target = $region17
    $region16: #{tpu_custom_call.1} parent=1 // pred_region
      %s45 = ssub.s32 4096, 4096
      %46 = vsyncadd [#allocation6], %s45
      %s47 = sshll.u32 [#allocation7], 4
      %s48 = int_to_ptr.vmem [resolvable:$true] %s47
      %53 = dma.hbm_to_vmem [thread:$0]  %s3, 4096, %s48, [#allocation6], 64, 64, 4
    $region17: #{tpu_custom_call.1} parent=1 // pred_fallthru
      _
    // Predicated region
    $region18: #{tpu_custom_call.1} parent=1 // pred_check
      _
    $region19: #{tpu_custom_call.1} parent=1 // pred_check_branch
      %55 = sbr.rel (0) target = $region21
    $region20: #{tpu_custom_call.1} parent=1 // pred_region
      _
    $region21: #{tpu_custom_call.1} parent=1 // pred_fallthru
      _
    // Predicated region
    $region22: #{tpu_custom_call.1} parent=1 // pred_check
      _
    $region23: #{tpu_custom_call.1} parent=1 // pred_check_branch
      %57 = sbr.rel (0) target = $region25
    $region24: #{tpu_custom_call.1} parent=1 // pred_region
      %s59 = ssub.s32 1024, 1024
      %60 = vsyncadd [#allocation9], %s59
      %s61 = sshll.u32 [#allocation8], 4
      %s62 = int_to_ptr.vmem [resolvable:$true] %s61
      %67 = dma.hbm_to_vmem [thread:$0]  %s5, 1024, %s62, [#allocation9], 64, 64, 4
    $region25: #{tpu_custom_call.1} parent=1 // pred_fallthru
      _
    // Predicated region
    $region26: #{tpu_custom_call.1} parent=1 // pred_check
      _
    $region27: #{tpu_custom_call.1} parent=1 // pred_check_branch
      %69 = sbr.rel (0) target = $region29
    $region28: #{tpu_custom_call.1} parent=1 // pred_region
      _
    $region29: #{tpu_custom_call.1} parent=1 // pred_fallthru
      _
    // Predicated region
    $region30: #{tpu_custom_call.1} parent=1 // pred_check
      _
    $region31: #{tpu_custom_call.1} parent=1 // pred_check_branch
      %71 = sbr.rel (0) target = $region33
    $region32: #{tpu_custom_call.1} parent=1 // pred_region
      %72 = dma.done [#allocation3], 256
    $region33: #{tpu_custom_call.1} parent=1 // pred_fallthru
      _
    // Predicated region
    $region34: #{tpu_custom_call.1} parent=1 // pred_check
      _
    $region35: #{tpu_custom_call.1} parent=1 // pred_check_branch
      %74 = sbr.rel (0) target = $region37
    $region36: #{tpu_custom_call.1} parent=1 // pred_region
      %75 = dma.done [#allocation6], 1024
    $region37: #{tpu_custom_call.1} parent=1 // pred_fallthru
      _
    // Predicated region
    $region38: #{tpu_custom_call.1} parent=1 // pred_check
      _
    $region39: #{tpu_custom_call.1} parent=1 // pred_check_branch
      %77 = sbr.rel (0) target = $region41
    $region40: #{tpu_custom_call.1} parent=1 // pred_region
      %78 = dma.done [#allocation6], 4096
    $region41: #{tpu_custom_call.1} parent=1 // pred_fallthru
      _
    // Predicated region
    $region42: #{tpu_custom_call.1} parent=1 // pred_check
      _
    $region43: #{tpu_custom_call.1} parent=1 // pred_check_branch
      %80 = sbr.rel (0) target = $region45
    $region44: #{tpu_custom_call.1} parent=1 // pred_region
      %81 = dma.done [#allocation9], 1024
    $region45: #{tpu_custom_call.1} parent=1 // pred_fallthru
      _
    %v83 = vld [vmem:[#allocation2] sm:$0xff]
    %v84 = vld [vmem:[#allocation2 + $0x8] sm:$0xff]
    %v85 = vld [vmem:[#allocation5] sm:$0xf]
    %v86 = vld [vmem:[#allocation5 + $0x4] sm:$0xf]
    %v87 = vld [vmem:[#allocation5 + $0x8] sm:$0xf]
    %v88 = vld [vmem:[#allocation5 + $0xc] sm:$0xf]
    %v89 = vld [vmem:[#allocation5 + $0x10] sm:$0xf]
    %v90 = vld [vmem:[#allocation5 + $0x14] sm:$0xf]
    %v91 = vld [vmem:[#allocation5 + $0x18] sm:$0xf]
    %v92 = vld [vmem:[#allocation5 + $0x1c] sm:$0xf]
    %v93 = vld [vmem:[#allocation5 + $0x20] sm:$0xf]
    %v94 = vld [vmem:[#allocation5 + $0x24] sm:$0xf]
    %v95 = vld [vmem:[#allocation5 + $0x28] sm:$0xf]
    %v96 = vld [vmem:[#allocation5 + $0x2c] sm:$0xf]
    %v97 = vld [vmem:[#allocation5 + $0x30] sm:$0xf]
    %v98 = vld [vmem:[#allocation5 + $0x34] sm:$0xf]
    %v99 = vld [vmem:[#allocation5 + $0x38] sm:$0xf]
    %v100 = vld [vmem:[#allocation5 + $0x3c] sm:$0xf]
    %v101 = vld [vmem:[%s2] sm:$0x1]
    %v102 = vpack.c.bf16 %v84, %v83
    %v104 = vlaneseq
    %v105 = vshrl.u32 %v104, 7
    %v106 = vsub.s32 0, %v105
    %v107 = vrot.slane %v101, %v106
    %v125 = vunpack.c.l.b16 %v85
    %v126 = vunpack.c.l.b16 %v86
    %v127 = vunpack.c.l.b16 %v87
    %v128 = vunpack.c.l.b16 %v88
    %v129 = vunpack.c.l.b16 %v89
    %v130 = vunpack.c.l.b16 %v90
    %v131 = vunpack.c.l.b16 %v91
    %v132 = vunpack.c.l.b16 %v92
    %v133 = vunpack.c.l.b16 %v93
    %v134 = vunpack.c.l.b16 %v94
    %v135 = vunpack.c.l.b16 %v95
    %v136 = vunpack.c.l.b16 %v96
    %v137 = vunpack.c.l.b16 %v97
    %v138 = vunpack.c.l.b16 %v98
    %v139 = vunpack.c.l.b16 %v99
    %v140 = vunpack.c.l.b16 %v100
    %v141 = vpack.c.b16 %v126, %v125
    %v142 = vpack.c.b16 %v128, %v127
    %v143 = vpack.c.b16 %v130, %v129
    %v144 = vpack.c.b16 %v132, %v131
    %v145 = vpack.c.b16 %v134, %v133
    %v146 = vpack.c.b16 %v136, %v135
    %v147 = vpack.c.b16 %v138, %v137
    %v148 = vpack.c.b16 %v140, %v139
    %157 = vmatprep.subr.bf16.mxu0 0
    %158 = vmatpush1.bf16.msra.mxu0 %v148
    %159 = vmatprep.subr.bf16.mxu0 0
    %160 = vmatpush1.bf16.msra.mxu0 %v147
    %161 = vmatprep.subr.bf16.mxu0 0
    %162 = vmatpush1.bf16.msra.mxu0 %v146
    %163 = vmatprep.subr.bf16.mxu0 0
    %164 = vmatpush1.bf16.msra.mxu0 %v145
    %165 = vmatprep.subr.bf16.mxu0 0
    %166 = vmatpush1.bf16.msra.mxu0 %v144
    %167 = vmatprep.subr.bf16.mxu0 0
    %168 = vmatpush1.bf16.msra.mxu0 %v143
    %169 = vmatprep.subr.bf16.mxu0 0
    %170 = vmatpush1.bf16.msra.mxu0 %v142
    %171 = vmatprep.subr.bf16.mxu0 0
    %172 = vmatpush1.bf16.msra.mxu0 %v141
    %173 = vmatprep.subr.bf16.mxu0 0
    %174 = vmatpush2.bf16.msra.mxu0 0
    %175 = vmatprep.subr.bf16.mxu0 0
    %176 = vmatpush2.bf16.msra.mxu0 0
    %177 = vmatprep.subr.bf16.mxu0 0
    %178 = vmatpush2.bf16.msra.mxu0 0
    %179 = vmatprep.subr.bf16.mxu0 0
    %180 = vmatpush2.bf16.msra.mxu0 0
    %181 = vmatprep.subr.bf16.mxu0 0
    %182 = vmatpush2.bf16.msra.mxu0 0
    %183 = vmatprep.subr.bf16.mxu0 0
    %184 = vmatpush2.bf16.msra.mxu0 0
    %185 = vmatprep.subr.bf16.mxu0 0
    %186 = vmatpush2.bf16.msra.mxu0 0
    %187 = vmatprep.subr.bf16.mxu0 0
    %188 = vmatpush2.bf16.msra.mxu0 0
    %189 = vmatprep.mubr.bf16.mxu0 0
    %190 = vmatmul.mubr.bf16.gmra.mxu0 %v102
    %v191 = vpop.f32.mrf.mxu0
    %v192 = vadd.f32 %v107, %v191
    %v193 = vpop.f32.mrf.mxu0
    %v194 = vpop.f32.mrf.mxu0
    %v195 = vadd.f32 %v107, %v194
    %v196 = vpop.f32.mrf.mxu0
    %197 = vdwg.mxu0
    %v198 = vmax.f32 %v192, 0.0
    %v199 = vmax.f32 %v195, 0.0
    %v200 = vld [vmem:[#allocation7] sm:$0xf]
    %v201 = vld [vmem:[#allocation7 + $0x4] sm:$0xf]
    %v202 = vld [vmem:[#allocation7 + $0x8] sm:$0xf]
    %v203 = vld [vmem:[#allocation7 + $0xc] sm:$0xf]
    %v204 = vld [vmem:[#allocation7 + $0x10] sm:$0xf]
    %v205 = vld [vmem:[#allocation7 + $0x14] sm:$0xf]
    %v206 = vld [vmem:[#allocation7 + $0x18] sm:$0xf]
    %v207 = vld [vmem:[#allocation7 + $0x1c] sm:$0xf]
    %v208 = vld [vmem:[#allocation7 + $0x20] sm:$0xf]
    %v209 = vld [vmem:[#allocation7 + $0x24] sm:$0xf]
    %v210 = vld [vmem:[#allocation7 + $0x28] sm:$0xf]
    %v211 = vld [vmem:[#allocation7 + $0x2c] sm:$0xf]
    %v212 = vld [vmem:[#allocation7 + $0x30] sm:$0xf]
    %v213 = vld [vmem:[#allocation7 + $0x34] sm:$0xf]
    %v214 = vld [vmem:[#allocation7 + $0x38] sm:$0xf]
    %v215 = vld [vmem:[#allocation7 + $0x3c] sm:$0xf]
    %v216 = vld [vmem:[%s4] sm:$0x1]
    %v217 = vpack.c.bf16 %v199, %v198
    %v219 = vlaneseq
    %v220 = vshrl.u32 %v219, 7
    %v221 = vsub.s32 0, %v220
    %v222 = vrot.slane %v216, %v221
    %v240 = vunpack.c.l.b16 %v200
    %v241 = vunpack.c.l.b16 %v201
    %v242 = vunpack.c.l.b16 %v202
    %v243 = vunpack.c.l.b16 %v203
    %v244 = vunpack.c.l.b16 %v204
    %v245 = vunpack.c.l.b16 %v205
    %v246 = vunpack.c.l.b16 %v206
    %v247 = vunpack.c.l.b16 %v207
    %v248 = vunpack.c.l.b16 %v208
    %v249 = vunpack.c.l.b16 %v209
    %v250 = vunpack.c.l.b16 %v210
    %v251 = vunpack.c.l.b16 %v211
    %v252 = vunpack.c.l.b16 %v212
    %v253 = vunpack.c.l.b16 %v213
    %v254 = vunpack.c.l.b16 %v214
    %v255 = vunpack.c.l.b16 %v215
    %v256 = vpack.c.b16 %v241, %v240
    %v257 = vpack.c.b16 %v243, %v242
    %v258 = vpack.c.b16 %v245, %v244
    %v259 = vpack.c.b16 %v247, %v246
    %v260 = vpack.c.b16 %v249, %v248
    %v261 = vpack.c.b16 %v251, %v250
    %v262 = vpack.c.b16 %v253, %v252
    %v263 = vpack.c.b16 %v255, %v254
    %272 = vmatprep.subr.bf16.mxu0 0
    %273 = vmatpush1.bf16.msra.mxu0 %v263
    %274 = vmatprep.subr.bf16.mxu0 0
    %275 = vmatpush1.bf16.msra.mxu0 %v262
    %276 = vmatprep.subr.bf16.mxu0 0
    %277 = vmatpush1.bf16.msra.mxu0 %v261
    %278 = vmatprep.subr.bf16.mxu0 0
    %279 = vmatpush1.bf16.msra.mxu0 %v260
    %280 = vmatprep.subr.bf16.mxu0 0
    %281 = vmatpush1.bf16.msra.mxu0 %v259
    %282 = vmatprep.subr.bf16.mxu0 0
    %283 = vmatpush1.bf16.msra.mxu0 %v258
    %284 = vmatprep.subr.bf16.mxu0 0
    %285 = vmatpush1.bf16.msra.mxu0 %v257
    %286 = vmatprep.subr.bf16.mxu0 0
    %287 = vmatpush1.bf16.msra.mxu0 %v256
    %288 = vmatprep.subr.bf16.mxu0 0
    %289 = vmatpush2.bf16.msra.mxu0 0
    %290 = vmatprep.subr.bf16.mxu0 0
    %291 = vmatpush2.bf16.msra.mxu0 0
    %292 = vmatprep.subr.bf16.mxu0 0
    %293 = vmatpush2.bf16.msra.mxu0 0
    %294 = vmatprep.subr.bf16.mxu0 0
    %295 = vmatpush2.bf16.msra.mxu0 0
    %296 = vmatprep.subr.bf16.mxu0 0
    %297 = vmatpush2.bf16.msra.mxu0 0
    %298 = vmatprep.subr.bf16.mxu0 0
    %299 = vmatpush2.bf16.msra.mxu0 0
    %300 = vmatprep.subr.bf16.mxu0 0
    %301 = vmatpush2.bf16.msra.mxu0 0
    %302 = vmatprep.subr.bf16.mxu0 0
    %303 = vmatpush2.bf16.msra.mxu0 0
    %304 = vmatprep.mubr.bf16.mxu0 0
    %305 = vmatmul.mubr.bf16.gmra.mxu0 %v217
    %v306 = vpop.f32.mrf.mxu0
    %v307 = vadd.f32 %v222, %v306
    %v308 = vpop.f32.mrf.mxu0
    %v309 = vpop.f32.mrf.mxu0
    %v310 = vadd.f32 %v222, %v309
    %v311 = vpop.f32.mrf.mxu0
    %312 = vdwg.mxu0
    %v313 = vmax.f32 %v307, 0.0
    %v314 = vmax.f32 %v310, 0.0
    %s315 = scalar_lea.vmem [#allocation7], 64
    %v316 = vld [vmem:[%s315] sm:$0xf]
    %v317 = vld [vmem:[%s315 + $0x4] sm:$0xf]
    %v318 = vld [vmem:[%s315 + $0x8] sm:$0xf]
    %v319 = vld [vmem:[%s315 + $0xc] sm:$0xf]
    %v320 = vld [vmem:[%s315 + $0x10] sm:$0xf]
    %v321 = vld [vmem:[%s315 + $0x14] sm:$0xf]
    %v322 = vld [vmem:[%s315 + $0x18] sm:$0xf]
    %v323 = vld [vmem:[%s315 + $0x1c] sm:$0xf]
    %v324 = vld [vmem:[%s315 + $0x20] sm:$0xf]
    %v325 = vld [vmem:[%s315 + $0x24] sm:$0xf]
    %v326 = vld [vmem:[%s315 + $0x28] sm:$0xf]
    %v327 = vld [vmem:[%s315 + $0x2c] sm:$0xf]
    %v328 = vld [vmem:[%s315 + $0x30] sm:$0xf]
    %v329 = vld [vmem:[%s315 + $0x34] sm:$0xf]
    %v330 = vld [vmem:[%s315 + $0x38] sm:$0xf]
    %v331 = vld [vmem:[%s315 + $0x3c] sm:$0xf]
    %s332 = scalar_lea.vmem %s4, 1
    %v333 = vld [vmem:[%s332] sm:$0x1]
    %v334 = vpack.c.bf16 %v314, %v313
    %v336 = vlaneseq
    %v337 = vshrl.u32 %v336, 7
    %v338 = vsub.s32 0, %v337
    %v339 = vrot.slane %v333, %v338
    %v357 = vunpack.c.l.b16 %v316
    %v358 = vunpack.c.l.b16 %v317
    %v359 = vunpack.c.l.b16 %v318
    %v360 = vunpack.c.l.b16 %v319
    %v361 = vunpack.c.l.b16 %v320
    %v362 = vunpack.c.l.b16 %v321
    %v363 = vunpack.c.l.b16 %v322
    %v364 = vunpack.c.l.b16 %v323
    %v365 = vunpack.c.l.b16 %v324
    %v366 = vunpack.c.l.b16 %v325
    %v367 = vunpack.c.l.b16 %v326
    %v368 = vunpack.c.l.b16 %v327
    %v369 = vunpack.c.l.b16 %v328
    %v370 = vunpack.c.l.b16 %v329
    %v371 = vunpack.c.l.b16 %v330
    %v372 = vunpack.c.l.b16 %v331
    %v373 = vpack.c.b16 %v358, %v357
    %v374 = vpack.c.b16 %v360, %v359
    %v375 = vpack.c.b16 %v362, %v361
    %v376 = vpack.c.b16 %v364, %v363
    %v377 = vpack.c.b16 %v366, %v365
    %v378 = vpack.c.b16 %v368, %v367
    %v379 = vpack.c.b16 %v370, %v369
    %v380 = vpack.c.b16 %v372, %v371
    %389 = vmatprep.subr.bf16.mxu0 0
    %390 = vmatpush1.bf16.msra.mxu0 %v380
    %391 = vmatprep.subr.bf16.mxu0 0
    %392 = vmatpush1.bf16.msra.mxu0 %v379
    %393 = vmatprep.subr.bf16.mxu0 0
    %394 = vmatpush1.bf16.msra.mxu0 %v378
    %395 = vmatprep.subr.bf16.mxu0 0
    %396 = vmatpush1.bf16.msra.mxu0 %v377
    %397 = vmatprep.subr.bf16.mxu0 0
    %398 = vmatpush1.bf16.msra.mxu0 %v376
    %399 = vmatprep.subr.bf16.mxu0 0
    %400 = vmatpush1.bf16.msra.mxu0 %v375
    %401 = vmatprep.subr.bf16.mxu0 0
    %402 = vmatpush1.bf16.msra.mxu0 %v374
    %403 = vmatprep.subr.bf16.mxu0 0
    %404 = vmatpush1.bf16.msra.mxu0 %v373
    %405 = vmatprep.subr.bf16.mxu0 0
    %406 = vmatpush2.bf16.msra.mxu0 0
    %407 = vmatprep.subr.bf16.mxu0 0
    %408 = vmatpush2.bf16.msra.mxu0 0
    %409 = vmatprep.subr.bf16.mxu0 0
    %410 = vmatpush2.bf16.msra.mxu0 0
    %411 = vmatprep.subr.bf16.mxu0 0
    %412 = vmatpush2.bf16.msra.mxu0 0
    %413 = vmatprep.subr.bf16.mxu0 0
    %414 = vmatpush2.bf16.msra.mxu0 0
    %415 = vmatprep.subr.bf16.mxu0 0
    %416 = vmatpush2.bf16.msra.mxu0 0
    %417 = vmatprep.subr.bf16.mxu0 0
    %418 = vmatpush2.bf16.msra.mxu0 0
    %419 = vmatprep.subr.bf16.mxu0 0
    %420 = vmatpush2.bf16.msra.mxu0 0
    %421 = vmatprep.mubr.bf16.mxu0 0
    %422 = vmatmul.mubr.bf16.gmra.mxu0 %v334
    %v423 = vpop.f32.mrf.mxu0
    %v424 = vadd.f32 %v339, %v423
    %v425 = vpop.f32.mrf.mxu0
    %v426 = vpop.f32.mrf.mxu0
    %v427 = vadd.f32 %v339, %v426
    %v428 = vpop.f32.mrf.mxu0
    %429 = vdwg.mxu0
    %v430 = vmax.f32 %v424, 0.0
    %v431 = vmax.f32 %v427, 0.0
    %v432 = vadd.f32 %v198, %v430
    %v433 = vadd.f32 %v199, %v431
    %s434 = scalar_lea.vmem [#allocation7], 128
    %v435 = vld [vmem:[%s434] sm:$0xf]
    %v436 = vld [vmem:[%s434 + $0x4] sm:$0xf]
    %v437 = vld [vmem:[%s434 + $0x8] sm:$0xf]
    %v438 = vld [vmem:[%s434 + $0xc] sm:$0xf]
    %v439 = vld [vmem:[%s434 + $0x10] sm:$0xf]
    %v440 = vld [vmem:[%s434 + $0x14] sm:$0xf]
    %v441 = vld [vmem:[%s434 + $0x18] sm:$0xf]
    %v442 = vld [vmem:[%s434 + $0x1c] sm:$0xf]
    %v443 = vld [vmem:[%s434 + $0x20] sm:$0xf]
    %v444 = vld [vmem:[%s434 + $0x24] sm:$0xf]
    %v445 = vld [vmem:[%s434 + $0x28] sm:$0xf]
    %v446 = vld [vmem:[%s434 + $0x2c] sm:$0xf]
    %v447 = vld [vmem:[%s434 + $0x30] sm:$0xf]
    %v448 = vld [vmem:[%s434 + $0x34] sm:$0xf]
    %v449 = vld [vmem:[%s434 + $0x38] sm:$0xf]
    %v450 = vld [vmem:[%s434 + $0x3c] sm:$0xf]
    %s451 = scalar_lea.vmem %s4, 2
    %v452 = vld [vmem:[%s451] sm:$0x1]
    %v453 = vpack.c.bf16 %v433, %v432
    %v455 = vlaneseq
    %v456 = vshrl.u32 %v455, 7
    %v457 = vsub.s32 0, %v456
    %v458 = vrot.slane %v452, %v457
    %v476 = vunpack.c.l.b16 %v435
    %v477 = vunpack.c.l.b16 %v436
    %v478 = vunpack.c.l.b16 %v437
    %v479 = vunpack.c.l.b16 %v438
    %v480 = vunpack.c.l.b16 %v439
    %v481 = vunpack.c.l.b16 %v440
    %v482 = vunpack.c.l.b16 %v441
    %v483 = vunpack.c.l.b16 %v442
    %v484 = vunpack.c.l.b16 %v443
    %v485 = vunpack.c.l.b16 %v444
    %v486 = vunpack.c.l.b16 %v445
    %v487 = vunpack.c.l.b16 %v446
    %v488 = vunpack.c.l.b16 %v447
    %v489 = vunpack.c.l.b16 %v448
    %v490 = vunpack.c.l.b16 %v449
    %v491 = vunpack.c.l.b16 %v450
    %v492 = vpack.c.b16 %v477, %v476
    %v493 = vpack.c.b16 %v479, %v478
    %v494 = vpack.c.b16 %v481, %v480
    %v495 = vpack.c.b16 %v483, %v482
    %v496 = vpack.c.b16 %v485, %v484
    %v497 = vpack.c.b16 %v487, %v486
    %v498 = vpack.c.b16 %v489, %v488
    %v499 = vpack.c.b16 %v491, %v490
    %508 = vmatprep.subr.bf16.mxu0 0
    %509 = vmatpush1.bf16.msra.mxu0 %v499
    %510 = vmatprep.subr.bf16.mxu0 0
    %511 = vmatpush1.bf16.msra.mxu0 %v498
    %512 = vmatprep.subr.bf16.mxu0 0
    %513 = vmatpush1.bf16.msra.mxu0 %v497
    %514 = vmatprep.subr.bf16.mxu0 0
    %515 = vmatpush1.bf16.msra.mxu0 %v496
    %516 = vmatprep.subr.bf16.mxu0 0
    %517 = vmatpush1.bf16.msra.mxu0 %v495
    %518 = vmatprep.subr.bf16.mxu0 0
    %519 = vmatpush1.bf16.msra.mxu0 %v494
    %520 = vmatprep.subr.bf16.mxu0 0
    %521 = vmatpush1.bf16.msra.mxu0 %v493
    %522 = vmatprep.subr.bf16.mxu0 0
    %523 = vmatpush1.bf16.msra.mxu0 %v492
    %524 = vmatprep.subr.bf16.mxu0 0
    %525 = vmatpush2.bf16.msra.mxu0 0
    %526 = vmatprep.subr.bf16.mxu0 0
    %527 = vmatpush2.bf16.msra.mxu0 0
    %528 = vmatprep.subr.bf16.mxu0 0
    %529 = vmatpush2.bf16.msra.mxu0 0
    %530 = vmatprep.subr.bf16.mxu0 0
    %531 = vmatpush2.bf16.msra.mxu0 0
    %532 = vmatprep.subr.bf16.mxu0 0
    %533 = vmatpush2.bf16.msra.mxu0 0
    %534 = vmatprep.subr.bf16.mxu0 0
    %535 = vmatpush2.bf16.msra.mxu0 0
    %536 = vmatprep.subr.bf16.mxu0 0
    %537 = vmatpush2.bf16.msra.mxu0 0
    %538 = vmatprep.subr.bf16.mxu0 0
    %539 = vmatpush2.bf16.msra.mxu0 0
    %540 = vmatprep.mubr.bf16.mxu0 0
    %541 = vmatmul.mubr.bf16.gmra.mxu0 %v453
    %v542 = vpop.f32.mrf.mxu0
    %v543 = vadd.f32 %v458, %v542
    %v544 = vpop.f32.mrf.mxu0
    %v545 = vpop.f32.mrf.mxu0
    %v546 = vadd.f32 %v458, %v545
    %v547 = vpop.f32.mrf.mxu0
    %548 = vdwg.mxu0
    %v549 = vmax.f32 %v543, 0.0
    %v550 = vmax.f32 %v546, 0.0
    %s551 = scalar_lea.vmem [#allocation7], 192
    %v552 = vld [vmem:[%s551] sm:$0xf]
    %v553 = vld [vmem:[%s551 + $0x4] sm:$0xf]
    %v554 = vld [vmem:[%s551 + $0x8] sm:$0xf]
    %v555 = vld [vmem:[%s551 + $0xc] sm:$0xf]
    %v556 = vld [vmem:[%s551 + $0x10] sm:$0xf]
    %v557 = vld [vmem:[%s551 + $0x14] sm:$0xf]
    %v558 = vld [vmem:[%s551 + $0x18] sm:$0xf]
    %v559 = vld [vmem:[%s551 + $0x1c] sm:$0xf]
    %v560 = vld [vmem:[%s551 + $0x20] sm:$0xf]
    %v561 = vld [vmem:[%s551 + $0x24] sm:$0xf]
    %v562 = vld [vmem:[%s551 + $0x28] sm:$0xf]
    %v563 = vld [vmem:[%s551 + $0x2c] sm:$0xf]
    %v564 = vld [vmem:[%s551 + $0x30] sm:$0xf]
    %v565 = vld [vmem:[%s551 + $0x34] sm:$0xf]
    %v566 = vld [vmem:[%s551 + $0x38] sm:$0xf]
    %v567 = vld [vmem:[%s551 + $0x3c] sm:$0xf]
    %s568 = scalar_lea.vmem %s4, 3
    %v569 = vld [vmem:[%s568] sm:$0x1]
    %v570 = vpack.c.bf16 %v550, %v549
    %v572 = vlaneseq
    %v573 = vshrl.u32 %v572, 7
    %v574 = vsub.s32 0, %v573
    %v575 = vrot.slane %v569, %v574
    %v593 = vunpack.c.l.b16 %v552
    %v594 = vunpack.c.l.b16 %v553
    %v595 = vunpack.c.l.b16 %v554
    %v596 = vunpack.c.l.b16 %v555
    %v597 = vunpack.c.l.b16 %v556
    %v598 = vunpack.c.l.b16 %v557
    %v599 = vunpack.c.l.b16 %v558
    %v600 = vunpack.c.l.b16 %v559
    %v601 = vunpack.c.l.b16 %v560
    %v602 = vunpack.c.l.b16 %v561
    %v603 = vunpack.c.l.b16 %v562
    %v604 = vunpack.c.l.b16 %v563
    %v605 = vunpack.c.l.b16 %v564
    %v606 = vunpack.c.l.b16 %v565
    %v607 = vunpack.c.l.b16 %v566
    %v608 = vunpack.c.l.b16 %v567
    %v609 = vpack.c.b16 %v594, %v593
    %v610 = vpack.c.b16 %v596, %v595
    %v611 = vpack.c.b16 %v598, %v597
    %v612 = vpack.c.b16 %v600, %v599
    %v613 = vpack.c.b16 %v602, %v601
    %v614 = vpack.c.b16 %v604, %v603
    %v615 = vpack.c.b16 %v606, %v605
    %v616 = vpack.c.b16 %v608, %v607
    %625 = vmatprep.subr.bf16.mxu0 0
    %626 = vmatpush1.bf16.msra.mxu0 %v616
    %627 = vmatprep.subr.bf16.mxu0 0
    %628 = vmatpush1.bf16.msra.mxu0 %v615
    %629 = vmatprep.subr.bf16.mxu0 0
    %630 = vmatpush1.bf16.msra.mxu0 %v614
    %631 = vmatprep.subr.bf16.mxu0 0
    %632 = vmatpush1.bf16.msra.mxu0 %v613
    %633 = vmatprep.subr.bf16.mxu0 0
    %634 = vmatpush1.bf16.msra.mxu0 %v612
    %635 = vmatprep.subr.bf16.mxu0 0
    %636 = vmatpush1.bf16.msra.mxu0 %v611
    %637 = vmatprep.subr.bf16.mxu0 0
    %638 = vmatpush1.bf16.msra.mxu0 %v610
    %639 = vmatprep.subr.bf16.mxu0 0
    %640 = vmatpush1.bf16.msra.mxu0 %v609
    %641 = vmatprep.subr.bf16.mxu0 0
    %642 = vmatpush2.bf16.msra.mxu0 0
    %643 = vmatprep.subr.bf16.mxu0 0
    %644 = vmatpush2.bf16.msra.mxu0 0
    %645 = vmatprep.subr.bf16.mxu0 0
    %646 = vmatpush2.bf16.msra.mxu0 0
    %647 = vmatprep.subr.bf16.mxu0 0
    %648 = vmatpush2.bf16.msra.mxu0 0
    %649 = vmatprep.subr.bf16.mxu0 0
    %650 = vmatpush2.bf16.msra.mxu0 0
    %651 = vmatprep.subr.bf16.mxu0 0
    %652 = vmatpush2.bf16.msra.mxu0 0
    %653 = vmatprep.subr.bf16.mxu0 0
    %654 = vmatpush2.bf16.msra.mxu0 0
    %655 = vmatprep.subr.bf16.mxu0 0
    %656 = vmatpush2.bf16.msra.mxu0 0
    %657 = vmatprep.mubr.bf16.mxu0 0
    %658 = vmatmul.mubr.bf16.gmra.mxu0 %v570
    %v659 = vpop.f32.mrf.mxu0
    %v660 = vadd.f32 %v575, %v659
    %v661 = vpop.f32.mrf.mxu0
    %v662 = vpop.f32.mrf.mxu0
    %v663 = vadd.f32 %v575, %v662
    %v664 = vpop.f32.mrf.mxu0
    %665 = vdwg.mxu0
    %v666 = vmax.f32 %v660, 0.0
    %v667 = vmax.f32 %v663, 0.0
    %v668 = vadd.f32 %v432, %v666
    %v669 = vadd.f32 %v433, %v667
    %v670 = vld [vmem:[#allocation8] sm:$0xf]
    %v671 = vld [vmem:[#allocation8 + $0x4] sm:$0xf]
    %v672 = vld [vmem:[#allocation8 + $0x8] sm:$0xf]
    %v673 = vld [vmem:[#allocation8 + $0xc] sm:$0xf]
    %v674 = vld [vmem:[#allocation8 + $0x10] sm:$0xf]
    %v675 = vld [vmem:[#allocation8 + $0x14] sm:$0xf]
    %v676 = vld [vmem:[#allocation8 + $0x18] sm:$0xf]
    %v677 = vld [vmem:[#allocation8 + $0x1c] sm:$0xf]
    %v678 = vld [vmem:[#allocation8 + $0x20] sm:$0xf]
    %v679 = vld [vmem:[#allocation8 + $0x24] sm:$0xf]
    %v680 = vld [vmem:[#allocation8 + $0x28] sm:$0xf]
    %v681 = vld [vmem:[#allocation8 + $0x2c] sm:$0xf]
    %v682 = vld [vmem:[#allocation8 + $0x30] sm:$0xf]
    %v683 = vld [vmem:[#allocation8 + $0x34] sm:$0xf]
    %v684 = vld [vmem:[#allocation8 + $0x38] sm:$0xf]
    %v685 = vld [vmem:[#allocation8 + $0x3c] sm:$0xf]
    %v686 = vld [vmem:[%s6] sm:$0x1]
    %v687 = vpack.c.bf16 %v669, %v668
    %v689 = vlaneseq
    %v690 = vshrl.u32 %v689, 7
    %v691 = vsub.s32 0, %v690
    %v692 = vrot.slane %v686, %v691
    %v710 = vunpack.c.l.b16 %v670
    %v711 = vunpack.c.l.b16 %v671
    %v712 = vunpack.c.l.b16 %v672
    %v713 = vunpack.c.l.b16 %v673
    %v714 = vunpack.c.l.b16 %v674
    %v715 = vunpack.c.l.b16 %v675
    %v716 = vunpack.c.l.b16 %v676
    %v717 = vunpack.c.l.b16 %v677
    %v718 = vunpack.c.l.b16 %v678
    %v719 = vunpack.c.l.b16 %v679
    %v720 = vunpack.c.l.b16 %v680
    %v721 = vunpack.c.l.b16 %v681
    %v722 = vunpack.c.l.b16 %v682
    %v723 = vunpack.c.l.b16 %v683
    %v724 = vunpack.c.l.b16 %v684
    %v725 = vunpack.c.l.b16 %v685
    %v726 = vpack.c.b16 %v711, %v710
    %v727 = vpack.c.b16 %v713, %v712
    %v728 = vpack.c.b16 %v715, %v714
    %v729 = vpack.c.b16 %v717, %v716
    %v730 = vpack.c.b16 %v719, %v718
    %v731 = vpack.c.b16 %v721, %v720
    %v732 = vpack.c.b16 %v723, %v722
    %v733 = vpack.c.b16 %v725, %v724
    %742 = vmatprep.subr.bf16.mxu0 0
    %743 = vmatpush1.bf16.msra.mxu0 %v733
    %744 = vmatprep.subr.bf16.mxu0 0
    %745 = vmatpush1.bf16.msra.mxu0 %v732
    %746 = vmatprep.subr.bf16.mxu0 0
    %747 = vmatpush1.bf16.msra.mxu0 %v731
    %748 = vmatprep.subr.bf16.mxu0 0
    %749 = vmatpush1.bf16.msra.mxu0 %v730
    %750 = vmatprep.subr.bf16.mxu0 0
    %751 = vmatpush1.bf16.msra.mxu0 %v729
    %752 = vmatprep.subr.bf16.mxu0 0
    %753 = vmatpush1.bf16.msra.mxu0 %v728
    %754 = vmatprep.subr.bf16.mxu0 0
    %755 = vmatpush1.bf16.msra.mxu0 %v727
    %756 = vmatprep.subr.bf16.mxu0 0
    %757 = vmatpush1.bf16.msra.mxu0 %v726
    %758 = vmatprep.subr.bf16.mxu0 0
    %759 = vmatpush2.bf16.msra.mxu0 0
    %760 = vmatprep.subr.bf16.mxu0 0
    %761 = vmatpush2.bf16.msra.mxu0 0
    %762 = vmatprep.subr.bf16.mxu0 0
    %763 = vmatpush2.bf16.msra.mxu0 0
    %764 = vmatprep.subr.bf16.mxu0 0
    %765 = vmatpush2.bf16.msra.mxu0 0
    %766 = vmatprep.subr.bf16.mxu0 0
    %767 = vmatpush2.bf16.msra.mxu0 0
    %768 = vmatprep.subr.bf16.mxu0 0
    %769 = vmatpush2.bf16.msra.mxu0 0
    %770 = vmatprep.subr.bf16.mxu0 0
    %771 = vmatpush2.bf16.msra.mxu0 0
    %772 = vmatprep.subr.bf16.mxu0 0
    %773 = vmatpush2.bf16.msra.mxu0 0
    %774 = vmatprep.mubr.bf16.mxu0 0
    %775 = vmatmul.mubr.bf16.gmra.mxu0 %v687
    %v776 = vpop.f32.mrf.mxu0
    %v777 = vadd.f32 %v692, %v776
    %v778 = vpop.f32.mrf.mxu0
    %v779 = vpop.f32.mrf.mxu0
    %v780 = vadd.f32 %v692, %v779
    %v781 = vpop.f32.mrf.mxu0
    %782 = vdwg.mxu0
    %783 = vst [vmem:[#allocation10] sm:$0xff] %v777
    %784 = vst [vmem:[#allocation10 + $0x8] sm:$0xff] %v780
    // Predicated region
    $region46: #{tpu_custom_call.1} parent=1 // pred_check
      _
    $region47: #{tpu_custom_call.1} parent=1 // pred_check_branch
      %786 = sbr.rel (0) target = $region49
    $region48: #{tpu_custom_call.1} parent=1 // pred_region
      %s788 = ssub.s32 256, 256
      %789 = vsyncadd [#allocation4], %s788
      %s790 = sshll.u32 [#allocation10], 4
      %s791 = int_to_ptr.vmem [resolvable:$true] %s790
      %796 = dma.vmem_to_hbm [thread:$0]  %s791, 256, %s7, [#allocation4], 128, 128, 8
    $region49: #{tpu_custom_call.1} parent=1 // pred_fallthru
      _
    // Predicated region
    $region50: #{tpu_custom_call.1} parent=1 // pred_check
      _
    $region51: #{tpu_custom_call.1} parent=1 // pred_check_branch
      %798 = sbr.rel (0) target = $region53
    $region52: #{tpu_custom_call.1} parent=1 // pred_region
      %799 = dma.done [#allocation4], 256
    $region53: #{tpu_custom_call.1} parent=1 // pred_fallthru
      _
    %800 = vsyncpa [#allocation3], 1
    %801 = vsyncpa [#allocation6], 1
    %802 = vsyncpa [#allocation9], 1
    %803 = vsyncpa [#allocation4], 1

</llo_original>
